<compile_context>
chip_gen: v7x
topology: tpu7x:2x2x1
jax: 0.10.0
libtpu: 0.0.40
codegen_flags: <defaults>
</compile_context>

<pallas_src>
import functools

import jax
import jax.numpy as jnp
import numpy as np
from jax.experimental import pallas as pl
from jax.experimental.pallas import tpu as pltpu


# ----------------------------------------------------------------------------
# Kernel: one batch-block per grid step; full (bb, T, D) slab in VMEM.
# ----------------------------------------------------------------------------
def _fft_block_kernel(n_head,
                      # data refs
                      x_ref, amask_ref, qmask_ref,
                      # packed parameters
                      wqkv_ref, bqkv_ref, wo_ref, w1_ref, b1_ref, w2_ref,
                      vecd_ref,
                      # outputs
                      out_ref, attn_ref):
    f32 = jnp.float32
    bf16 = jnp.bfloat16

    bb, T, D = x_ref.shape
    H = n_head
    dk = D // H

    x3 = x_ref[...].astype(f32)                     # (bb, T, D)
    amask = amask_ref[...]                          # (bb, T, T)
    qmask = qmask_ref[...].astype(f32)              # (bb, T, 1)

    x2 = x3.reshape(bb * T, D)                      # tall slab for row-wise ops

    vecd = vecd_ref[...]                            # (6, D) f32
    bo, g1, be1 = vecd[0:1], vecd[1:2], vecd[2:3]
    b2, g2, be2 = vecd[3:4], vecd[4:5], vecd[5:6]

    # ---- fused QKV projection (bf16 MXU, f32 accumulate) --------------------
    # Note: 1/sqrt(dk) is already folded into the wq / bq slice host-side.
    qkv = jnp.dot(x2.astype(bf16), wqkv_ref[...],
                  preferred_element_type=f32) + bqkv_ref[...]       # (bb*T, 3D)
    q = qkv[:, :D].reshape(bb, T, D).astype(bf16)
    k = qkv[:, D:2 * D].reshape(bb, T, D).astype(bf16)
    v = qkv[:, 2 * D:].reshape(bb, T, D).astype(bf16)

    # Additive mask bias, computed once (shared by all heads).
    mask_bias = jnp.where(amask > 0, 0.0, -1e9).astype(f32)         # (bb, T, T)

    wo = wo_ref[...]                                                 # (D, D) bf16

    # ---- multi-head attention (static unroll over H, batched over bb) -------
    p_heads = []
    attn_out = None
    for h in range(H):
        sl = slice(h * dk, (h + 1) * dk)
        s = jnp.einsum("btd,bsd->bts", q[:, :, sl], k[:, :, sl],
                       preferred_element_type=f32) + mask_bias       # (bb, T, T)
        e = jnp.exp(s - jnp.max(s, axis=-1, keepdims=True))
        p = e * pl.reciprocal(jnp.sum(e, axis=-1, keepdims=True), approx=True)
        p = p * qmask                                                 # (bb, T, T)
        p_heads.append(p)
        ctx = jnp.einsum("bts,bsd->btd", p.astype(bf16), v[:, :, sl],
                         preferred_element_type=f32)                  # (bb, T, dk)
        # Fold the output projection per head (avoids lane-axis concatenate).
        part = jnp.dot(ctx.reshape(bb * T, dk).astype(bf16), wo[sl, :],
                       preferred_element_type=f32)                    # (bb*T, D)
        attn_out = part if attn_out is None else attn_out + part

    # Single store of the attention probabilities.
    # (kept f32; emit bf16 here if the probs are only used for inspection)
    attn_ref[...] = jnp.stack(p_heads, axis=1).astype(attn_ref.dtype)

    # ---- residual + layer norm 1 --------------------------------------------
    y = x2 + attn_out + bo
    mu = jnp.mean(y, axis=-1, keepdims=True)
    yc = y - mu
    var = jnp.mean(yc * yc, axis=-1, keepdims=True)
    y = yc * jax.lax.rsqrt(var + 1e-5) * g1 + be1

    # ---- FFN + residual + query mask ----------------------------------------
    h1 = jnp.maximum(
        jnp.dot(y.astype(bf16), w1_ref[...], preferred_element_type=f32)
        + b1_ref[...], 0.0)
    fo = jnp.dot(h1.astype(bf16), w2_ref[...], preferred_element_type=f32) + b2
    z = (y + fo) * qmask.reshape(bb * T, 1)

    # ---- layer norm 2 ---------------------------------------------------------
    mu2 = jnp.mean(z, axis=-1, keepdims=True)
    zc = z - mu2
    var2 = jnp.mean(zc * zc, axis=-1, keepdims=True)
    out = zc * jax.lax.rsqrt(var2 + 1e-5) * g2 + be2

    out_ref[...] = out.reshape(bb, T, D).astype(out_ref.dtype)


# ----------------------------------------------------------------------------
# Host-side parameter packing (fused QKV, folded scale, bf16 weights).
# ----------------------------------------------------------------------------
def _prepare_params(params, n_head):
    D = params["wq"].shape[0]
    dk = D // n_head
    scale = 1.0 / np.sqrt(dk)
    f32, bf16 = jnp.float32, jnp.bfloat16

    wqkv = jnp.concatenate(
        [params["wq"] * scale, params["wk"], params["wv"]], axis=1).astype(bf16)
    bqkv = jnp.concatenate(
        [params["bq"] * scale, params["bk"], params["bv"]], axis=1).astype(f32)
    wo = params["wo"].astype(bf16)
    w1 = params["w1"].astype(bf16)
    b1 = params["b1"].astype(f32)
    w2 = params["w2"].astype(bf16)
    vecd = jnp.concatenate(
        [params["bo"], params["g1"], params["be1"],
         params["b2"], params["g2"], params["be2"]], axis=0).astype(f32)
    return wqkv, bqkv, wo, w1, b1, w2, vecd


def fft_block_pallas(x, attn_mask, query_mask, params, n_head, batch_block=None):
    B, T, D = x.shape
    assert D % n_head == 0, "feature dim must be divisible by n_head"
    # Default: fold the whole batch into one grid step (best on v5e/v6e).
    # On v7x (2 TensorCores) pass batch_block=B//2 to keep >=2 parallel steps.
    bb = B if batch_block is None else batch_block
    assert B % bb == 0, "batch must be divisible by batch_block"

    weights = _prepare_params(params, n_head)

    def data_spec(blk):
        nd = len(blk)
        return pl.BlockSpec(blk, lambda b, _nd=nd: (b,) + (0,) * (_nd - 1))

    def const_spec(shape):
        nd = len(shape)
        return pl.BlockSpec(shape, lambda b, _nd=nd: (0,) * _nd)

    in_specs = [
        data_spec((bb, T, D)),      # query
        data_spec((bb, T, T)),      # attn_mask
        data_spec((bb, T, 1)),      # query_mask
    ] + [const_spec(w.shape) for w in weights]

    out_specs = (
        pl.BlockSpec((bb, T, D), lambda b: (b, 0, 0)),
        pl.BlockSpec((bb, n_head, T, T), lambda b: (b, 0, 0, 0)),
    )
    out_shape = (
        jax.ShapeDtypeStruct((B, T, D), x.dtype),
        jax.ShapeDtypeStruct((B, n_head, T, T), jnp.float32),
    )

    kernel = functools.partial(_fft_block_kernel, n_head)

    return pl.pallas_call(
        kernel,
        grid=(B // bb,),
        in_specs=in_specs,
        out_specs=out_specs,
        out_shape=out_shape,
        compiler_params=pltpu.CompilerParams(
            dimension_semantics=("parallel",)),
    )(x, attn_mask, query_mask, *weights)


# ----------------------------------------------------------------------------
# Pure-JAX reference (same math, same bf16-operand / f32-accumulate dots).
# ----------------------------------------------------------------------------
def fft_block_ref(x, attn_mask, query_mask, p, n_head):
    f32, bf16 = jnp.float32, jnp.bfloat16
    B, T, D = x.shape
    dk = D // n_head
    scale = 1.0 / np.sqrt(dk)

    def bdot(a, w):
        return jnp.dot(a.astype(bf16), w.astype(bf16), preferred_element_type=f32)

    def ln(v, g, b, eps=1e-5):
        mu = v.mean(-1, keepdims=True)
        var = ((v - mu) ** 2).mean(-1, keepdims=True)
        return (v - mu) * jax.lax.rsqrt(var + eps) * g + b

    x32 = x.astype(f32)
    q = bdot(x32, p["wq"] * scale) + p["bq"] * scale
    k = bdot(x32, p["wk"]) + p["bk"]
    v = bdot(x32, p["wv"]) + p["bv"]

    def split(a):  # (B,T,D) -> (B,H,T,dk)
        return a.reshape(B, T, n_head, dk).transpose(0, 2, 1, 3)

    qh, kh, vh = split(q), split(k), split(v)
    s = jnp.einsum("bhtd,bhsd->bhts", qh.astype(bf16), kh.astype(bf16),
                   preferred_element_type=f32)
    s = jnp.where(attn_mask[:, None] > 0, s, -1e9)
    a = jax.nn.softmax(s, axis=-1)
    a = a * query_mask[:, None]
    ctx = jnp.einsum("bhts,bhsd->bhtd", a.astype(bf16), vh.astype(bf16),
                     preferred_element_type=f32)
    ctx = ctx.transpose(0, 2, 1, 3).reshape(B, T, D)
    y = x32 + bdot(ctx, p["wo"]) + p["bo"]
    y = ln(y, p["g1"], p["be1"])
    f = bdot(jnp.maximum(bdot(y, p["w1"]) + p["b1"], 0.0), p["w2"]) + p["b2"]
    z = (y + f) * query_mask
    out = ln(z, p["g2"], p["be2"])
    return out, a


# ----------------------------------------------------------------------------
if __name__ == "__main__":
    B, T, D, H, FF = 2, 8, 32, 4, 128   # idim=32, n_head=4, ffn hidden=4*idim

    key = jax.random.PRNGKey(0)
    ks = jax.random.split(key, 16)

    def init(k, shape, scale):
        return scale * jax.random.normal(k, shape, jnp.float32)

    s = 1.0 / np.sqrt(D)
    params = {
        "wq": init(ks[0], (D, D), s), "bq": init(ks[1], (1, D), 0.02),
        "wk": init(ks[2], (D, D), s), "bk": init(ks[3], (1, D), 0.02),
        "wv": init(ks[4], (D, D), s), "bv": init(ks[5], (1, D), 0.02),
        "wo": init(ks[6], (D, D), s), "bo": init(ks[7], (1, D), 0.02),
        "g1": jnp.ones((1, D), jnp.float32), "be1": jnp.zeros((1, D), jnp.float32),
        "w1": init(ks[8], (D, FF), s), "b1": init(ks[9], (1, FF), 0.02),
        "w2": init(ks[10], (FF, D), 1.0 / np.sqrt(FF)),
        "b2": init(ks[11], (1, D), 0.02),
        "g2": jnp.ones((1, D), jnp.float32), "be2": jnp.zeros((1, D), jnp.float32),
    }

    x = jax.random.normal(ks[12], (B, T, D), jnp.float32)
    lengths = jnp.array([T, T - 2])
    valid = (jnp.arange(T)[None, :] < lengths[:, None]).astype(jnp.float32)  # (B,T)
    query_mask = valid[:, :, None]                                           # (B,T,1)
    attn_mask = jnp.repeat(valid[:, None, :], T, axis=1)                     # (B,T,T)

    out, attns = fft_block_pallas(x, attn_mask, query_mask, params, H)
    jax.block_until_ready((out, attns))

    out_ref, attns_ref = fft_block_ref(x, attn_mask, query_mask, params, H)
    # bf16 matmul operands + approximate softmax reciprocal -> looser tolerance.
    np.testing.assert_allclose(np.asarray(out), np.asarray(out_ref),
                               rtol=1e-2, atol=1e-2)
    np.testing.assert_allclose(np.asarray(attns), np.asarray(attns_ref),
                               rtol=1e-2, atol=1e-2)
    print("KERNEL_OK")
</pallas_src>

<mosaic_0001>
module attributes {stable_mosaic.version = 11 : i64} {
  func.func @_fft_block_kernel(%arg0: i32, %arg1: memref<2x8x32xf32, #tpu.memory_space<vmem>>, %arg2: memref<2x8x8xf32, #tpu.memory_space<vmem>>, %arg3: memref<2x8x1xf32, #tpu.memory_space<vmem>>, %arg4: memref<32x96xbf16, #tpu.memory_space<vmem>>, %arg5: memref<1x96xf32, #tpu.memory_space<vmem>>, %arg6: memref<32x32xbf16, #tpu.memory_space<vmem>>, %arg7: memref<32x128xbf16, #tpu.memory_space<vmem>>, %arg8: memref<1x128xf32, #tpu.memory_space<vmem>>, %arg9: memref<128x32xbf16, #tpu.memory_space<vmem>>, %arg10: memref<6x32xf32, #tpu.memory_space<vmem>>, %arg11: memref<2x8x32xf32, #tpu.memory_space<vmem>>, %arg12: memref<2x4x8x8xf32, #tpu.memory_space<vmem>>) attributes {dimension_semantics = [#tpu.dimension_semantics<parallel>], iteration_bounds = array<i64: 1>, scalar_prefetch = 0 : i64, scratch_operands = 0 : i64, tpu.core_type = #tpu.core_type<tc>, window_params = [{transform_indices = @transform_0, window_bounds = array<i64: 2, 8, 32>}, {transform_indices = @transform_1, window_bounds = array<i64: 2, 8, 8>}, {transform_indices = @transform_2, window_bounds = array<i64: 2, 8, 1>}, {pipeline_mode = #tpu.pipeline_mode<synchronous>, transform_indices = @transform_3, window_bounds = array<i64: 32, 96>}, {pipeline_mode = #tpu.pipeline_mode<synchronous>, transform_indices = @transform_4, window_bounds = array<i64: 1, 96>}, {pipeline_mode = #tpu.pipeline_mode<synchronous>, transform_indices = @transform_5, window_bounds = array<i64: 32, 32>}, {pipeline_mode = #tpu.pipeline_mode<synchronous>, transform_indices = @transform_6, window_bounds = array<i64: 32, 128>}, {pipeline_mode = #tpu.pipeline_mode<synchronous>, transform_indices = @transform_7, window_bounds = array<i64: 1, 128>}, {pipeline_mode = #tpu.pipeline_mode<synchronous>, transform_indices = @transform_8, window_bounds = array<i64: 128, 32>}, {pipeline_mode = #tpu.pipeline_mode<synchronous>, transform_indices = @transform_9, window_bounds = array<i64: 6, 32>}, {transform_indices = @transform_10, window_bounds = array<i64: 2, 8, 32>}, {transform_indices = @transform_11, window_bounds = array<i64: 2, 4, 8, 8>}]} {
    %c0 = arith.constant 0 : index
    %c0_0 = arith.constant 0 : index
    %c0_1 = arith.constant 0 : index
    %0 = vector.load %arg1[%c0, %c0_0, %c0_1] : memref<2x8x32xf32, #tpu.memory_space<vmem>>, vector<2x8x32xf32>
    %c0_2 = arith.constant 0 : index
    %c0_3 = arith.constant 0 : index
    %c0_4 = arith.constant 0 : index
    %1 = vector.load %arg2[%c0_2, %c0_3, %c0_4] : memref<2x8x8xf32, #tpu.memory_space<vmem>>, vector<2x8x8xf32>
    %c0_5 = arith.constant 0 : index
    %c0_6 = arith.constant 0 : index
    %c0_7 = arith.constant 0 : index
    %2 = vector.load %arg3[%c0_5, %c0_6, %c0_7] : memref<2x8x1xf32, #tpu.memory_space<vmem>>, vector<2x8x1xf32>
    %3 = vector.shape_cast %0 : vector<2x8x32xf32> to vector<16x32xf32>
    %c0_8 = arith.constant 0 : index
    %c0_9 = arith.constant 0 : index
    %4 = vector.load %arg10[%c0_8, %c0_9] : memref<6x32xf32, #tpu.memory_space<vmem>>, vector<6x32xf32>
    %5 = vector.extract_strided_slice %4 {offsets = [0, 0], sizes = [1, 32], strides = [1, 1]} : vector<6x32xf32> to vector<1x32xf32>
    %6 = vector.extract_strided_slice %4 {offsets = [1, 0], sizes = [1, 32], strides = [1, 1]} : vector<6x32xf32> to vector<1x32xf32>
    %7 = vector.extract_strided_slice %4 {offsets = [2, 0], sizes = [1, 32], strides = [1, 1]} : vector<6x32xf32> to vector<1x32xf32>
    %8 = vector.extract_strided_slice %4 {offsets = [3, 0], sizes = [1, 32], strides = [1, 1]} : vector<6x32xf32> to vector<1x32xf32>
    %9 = vector.extract_strided_slice %4 {offsets = [4, 0], sizes = [1, 32], strides = [1, 1]} : vector<6x32xf32> to vector<1x32xf32>
    %10 = vector.extract_strided_slice %4 {offsets = [5, 0], sizes = [1, 32], strides = [1, 1]} : vector<6x32xf32> to vector<1x32xf32>
    %11 = arith.truncf %3 : vector<16x32xf32> to vector<16x32xbf16>
    %c0_10 = arith.constant 0 : index
    %c0_11 = arith.constant 0 : index
    %12 = vector.load %arg4[%c0_10, %c0_11] : memref<32x96xbf16, #tpu.memory_space<vmem>>, vector<32x96xbf16>
    %cst = arith.constant dense<0.000000e+00> : vector<16x96xf32>
    %13 = tpu.matmul %11, %12, %cst {dimension_numbers = #tpu.dot_dimension_numbers<[1], [0], [0], [1], [0, 0, 1, 1], [], []>} : vector<16x32xbf16>, vector<32x96xbf16>, vector<16x96xf32> -> vector<16x96xf32>
    %c0_12 = arith.constant 0 : index
    %c0_13 = arith.constant 0 : index
    %14 = vector.load %arg5[%c0_12, %c0_13] : memref<1x96xf32, #tpu.memory_space<vmem>>, vector<1x96xf32>
    %15 = vector.broadcast %14 : vector<1x96xf32> to vector<16x96xf32>
    %16 = arith.addf %13, %15 : vector<16x96xf32>
    %17 = vector.extract_strided_slice %16 {offsets = [0, 0], sizes = [16, 32], strides = [1, 1]} : vector<16x96xf32> to vector<16x32xf32>
    %18 = vector.shape_cast %17 : vector<16x32xf32> to vector<2x8x32xf32>
    %19 = arith.truncf %18 : vector<2x8x32xf32> to vector<2x8x32xbf16>
    %20 = vector.extract_strided_slice %16 {offsets = [0, 32], sizes = [16, 32], strides = [1, 1]} : vector<16x96xf32> to vector<16x32xf32>
    %21 = vector.shape_cast %20 : vector<16x32xf32> to vector<2x8x32xf32>
    %22 = arith.truncf %21 : vector<2x8x32xf32> to vector<2x8x32xbf16>
    %23 = vector.extract_strided_slice %16 {offsets = [0, 64], sizes = [16, 32], strides = [1, 1]} : vector<16x96xf32> to vector<16x32xf32>
    %24 = vector.shape_cast %23 : vector<16x32xf32> to vector<2x8x32xf32>
    %25 = arith.truncf %24 : vector<2x8x32xf32> to vector<2x8x32xbf16>
    %cst_14 = arith.constant 0.000000e+00 : f32
    %26 = vector.broadcast %cst_14 : f32 to vector<2x8x8xf32>
    %27 = arith.cmpf ogt, %1, %26 : vector<2x8x8xf32>
    %cst_15 = arith.constant 0.000000e+00 : f32
    %cst_16 = arith.constant -1.000000e+09 : f32
    %28 = vector.broadcast %cst_15 : f32 to vector<2x8x8xf32>
    %29 = vector.broadcast %cst_16 : f32 to vector<2x8x8xf32>
    %30 = arith.select %27, %28, %29 : vector<2x8x8xi1>, vector<2x8x8xf32>
    %c0_17 = arith.constant 0 : index
    %c0_18 = arith.constant 0 : index
    %31 = vector.load %arg6[%c0_17, %c0_18] : memref<32x32xbf16, #tpu.memory_space<vmem>>, vector<32x32xbf16>
    %32 = vector.extract_strided_slice %19 {offsets = [0, 0, 0], sizes = [2, 8, 8], strides = [1, 1, 1]} : vector<2x8x32xbf16> to vector<2x8x8xbf16>
    %33 = vector.extract_strided_slice %22 {offsets = [0, 0, 0], sizes = [2, 8, 8], strides = [1, 1, 1]} : vector<2x8x32xbf16> to vector<2x8x8xbf16>
    "tpu.trace_start"() <{level = 10 : i32, message = "btd,bsd->bts"}> : () -> ()
    %cst_19 = arith.constant dense<0.000000e+00> : vector<2x8x8xf32>
    %34 = tpu.matmul %32, %33, %cst_19 {dimension_numbers = #tpu.dot_dimension_numbers<[2], [2], [1], [1], [0, 0, 0, 1, 1, 1], [0], [0]>} : vector<2x8x8xbf16>, vector<2x8x8xbf16>, vector<2x8x8xf32> -> vector<2x8x8xf32>
    "tpu.trace_stop"() : () -> ()
    %35 = arith.addf %34, %30 : vector<2x8x8xf32>
    %cst_20 = arith.constant dense<0xFF800000> : vector<2x8xf32>
    %36 = vector.multi_reduction <maximumf>, %35, %cst_20 [2] : vector<2x8x8xf32> to vector<2x8xf32>
    %37 = vector.shape_cast %36 : vector<2x8xf32> to vector<2x8x1xf32>
    %38 = vector.broadcast %37 : vector<2x8x1xf32> to vector<2x8x8xf32>
    %39 = arith.subf %35, %38 : vector<2x8x8xf32>
    %40 = math.exp %39 : vector<2x8x8xf32>
    %cst_21 = arith.constant dense<0.000000e+00> : vector<2x8xf32>
    %41 = vector.multi_reduction <add>, %40, %cst_21 [2] : vector<2x8x8xf32> to vector<2x8xf32>
    %42 = vector.shape_cast %41 : vector<2x8xf32> to vector<2x8x1xf32>
    %43 = tpu.reciprocal %42 {approx = true} : vector<2x8x1xf32> -> vector<2x8x1xf32>
    %44 = vector.broadcast %43 : vector<2x8x1xf32> to vector<2x8x8xf32>
    %45 = arith.mulf %40, %44 : vector<2x8x8xf32>
    %46 = vector.broadcast %2 : vector<2x8x1xf32> to vector<2x8x8xf32>
    %47 = arith.mulf %45, %46 : vector<2x8x8xf32>
    %48 = arith.truncf %47 : vector<2x8x8xf32> to vector<2x8x8xbf16>
    %49 = vector.extract_strided_slice %25 {offsets = [0, 0, 0], sizes = [2, 8, 8], strides = [1, 1, 1]} : vector<2x8x32xbf16> to vector<2x8x8xbf16>
    "tpu.trace_start"() <{level = 10 : i32, message = "bts,bsd->btd"}> : () -> ()
    %cst_22 = arith.constant dense<0.000000e+00> : vector<2x8x8xf32>
    %50 = tpu.matmul %48, %49, %cst_22 {dimension_numbers = #tpu.dot_dimension_numbers<[2], [1], [1], [2], [0, 0, 0, 1, 1, 2], [0], [0]>} : vector<2x8x8xbf16>, vector<2x8x8xbf16>, vector<2x8x8xf32> -> vector<2x8x8xf32>
    "tpu.trace_stop"() : () -> ()
    %51 = vector.shape_cast %50 : vector<2x8x8xf32> to vector<16x8xf32>
    %52 = arith.truncf %51 : vector<16x8xf32> to vector<16x8xbf16>
    %53 = vector.extract_strided_slice %31 {offsets = [0, 0], sizes = [8, 32], strides = [1, 1]} : vector<32x32xbf16> to vector<8x32xbf16>
    %cst_23 = arith.constant dense<0.000000e+00> : vector<16x32xf32>
    %54 = tpu.matmul %52, %53, %cst_23 {dimension_numbers = #tpu.dot_dimension_numbers<[1], [0], [0], [1], [0, 0, 1, 1], [], []>} : vector<16x8xbf16>, vector<8x32xbf16>, vector<16x32xf32> -> vector<16x32xf32>
    %55 = vector.extract_strided_slice %19 {offsets = [0, 0, 8], sizes = [2, 8, 8], strides = [1, 1, 1]} : vector<2x8x32xbf16> to vector<2x8x8xbf16>
    %56 = vector.extract_strided_slice %22 {offsets = [0, 0, 8], sizes = [2, 8, 8], strides = [1, 1, 1]} : vector<2x8x32xbf16> to vector<2x8x8xbf16>
    "tpu.trace_start"() <{level = 10 : i32, message = "btd,bsd->bts"}> : () -> ()
    %cst_24 = arith.constant dense<0.000000e+00> : vector<2x8x8xf32>
    %57 = tpu.matmul %55, %56, %cst_24 {dimension_numbers = #tpu.dot_dimension_numbers<[2], [2], [1], [1], [0, 0, 0, 1, 1, 1], [0], [0]>} : vector<2x8x8xbf16>, vector<2x8x8xbf16>, vector<2x8x8xf32> -> vector<2x8x8xf32>
    "tpu.trace_stop"() : () -> ()
    %58 = arith.addf %57, %30 : vector<2x8x8xf32>
    %cst_25 = arith.constant dense<0xFF800000> : vector<2x8xf32>
    %59 = vector.multi_reduction <maximumf>, %58, %cst_25 [2] : vector<2x8x8xf32> to vector<2x8xf32>
    %60 = vector.shape_cast %59 : vector<2x8xf32> to vector<2x8x1xf32>
    %61 = vector.broadcast %60 : vector<2x8x1xf32> to vector<2x8x8xf32>
    %62 = arith.subf %58, %61 : vector<2x8x8xf32>
    %63 = math.exp %62 : vector<2x8x8xf32>
    %cst_26 = arith.constant dense<0.000000e+00> : vector<2x8xf32>
    %64 = vector.multi_reduction <add>, %63, %cst_26 [2] : vector<2x8x8xf32> to vector<2x8xf32>
    %65 = vector.shape_cast %64 : vector<2x8xf32> to vector<2x8x1xf32>
    %66 = tpu.reciprocal %65 {approx = true} : vector<2x8x1xf32> -> vector<2x8x1xf32>
    %67 = vector.broadcast %66 : vector<2x8x1xf32> to vector<2x8x8xf32>
    %68 = arith.mulf %63, %67 : vector<2x8x8xf32>
    %69 = vector.broadcast %2 : vector<2x8x1xf32> to vector<2x8x8xf32>
    %70 = arith.mulf %68, %69 : vector<2x8x8xf32>
    %71 = arith.truncf %70 : vector<2x8x8xf32> to vector<2x8x8xbf16>
    %72 = vector.extract_strided_slice %25 {offsets = [0, 0, 8], sizes = [2, 8, 8], strides = [1, 1, 1]} : vector<2x8x32xbf16> to vector<2x8x8xbf16>
    "tpu.trace_start"() <{level = 10 : i32, message = "bts,bsd->btd"}> : () -> ()
    %cst_27 = arith.constant dense<0.000000e+00> : vector<2x8x8xf32>
    %73 = tpu.matmul %71, %72, %cst_27 {dimension_numbers = #tpu.dot_dimension_numbers<[2], [1], [1], [2], [0, 0, 0, 1, 1, 2], [0], [0]>} : vector<2x8x8xbf16>, vector<2x8x8xbf16>, vector<2x8x8xf32> -> vector<2x8x8xf32>
    "tpu.trace_stop"() : () -> ()
    %74 = vector.shape_cast %73 : vector<2x8x8xf32> to vector<16x8xf32>
    %75 = arith.truncf %74 : vector<16x8xf32> to vector<16x8xbf16>
    %76 = vector.extract_strided_slice %31 {offsets = [8, 0], sizes = [8, 32], strides = [1, 1]} : vector<32x32xbf16> to vector<8x32xbf16>
    %cst_28 = arith.constant dense<0.000000e+00> : vector<16x32xf32>
    %77 = tpu.matmul %75, %76, %cst_28 {dimension_numbers = #tpu.dot_dimension_numbers<[1], [0], [0], [1], [0, 0, 1, 1], [], []>} : vector<16x8xbf16>, vector<8x32xbf16>, vector<16x32xf32> -> vector<16x32xf32>
    %78 = arith.addf %54, %77 : vector<16x32xf32>
    %79 = vector.extract_strided_slice %19 {offsets = [0, 0, 16], sizes = [2, 8, 8], strides = [1, 1, 1]} : vector<2x8x32xbf16> to vector<2x8x8xbf16>
    %80 = vector.extract_strided_slice %22 {offsets = [0, 0, 16], sizes = [2, 8, 8], strides = [1, 1, 1]} : vector<2x8x32xbf16> to vector<2x8x8xbf16>
    "tpu.trace_start"() <{level = 10 : i32, message = "btd,bsd->bts"}> : () -> ()
    %cst_29 = arith.constant dense<0.000000e+00> : vector<2x8x8xf32>
    %81 = tpu.matmul %79, %80, %cst_29 {dimension_numbers = #tpu.dot_dimension_numbers<[2], [2], [1], [1], [0, 0, 0, 1, 1, 1], [0], [0]>} : vector<2x8x8xbf16>, vector<2x8x8xbf16>, vector<2x8x8xf32> -> vector<2x8x8xf32>
    "tpu.trace_stop"() : () -> ()
    %82 = arith.addf %81, %30 : vector<2x8x8xf32>
    %cst_30 = arith.constant dense<0xFF800000> : vector<2x8xf32>
    %83 = vector.multi_reduction <maximumf>, %82, %cst_30 [2] : vector<2x8x8xf32> to vector<2x8xf32>
    %84 = vector.shape_cast %83 : vector<2x8xf32> to vector<2x8x1xf32>
    %85 = vector.broadcast %84 : vector<2x8x1xf32> to vector<2x8x8xf32>
    %86 = arith.subf %82, %85 : vector<2x8x8xf32>
    %87 = math.exp %86 : vector<2x8x8xf32>
    %cst_31 = arith.constant dense<0.000000e+00> : vector<2x8xf32>
    %88 = vector.multi_reduction <add>, %87, %cst_31 [2] : vector<2x8x8xf32> to vector<2x8xf32>
    %89 = vector.shape_cast %88 : vector<2x8xf32> to vector<2x8x1xf32>
    %90 = tpu.reciprocal %89 {approx = true} : vector<2x8x1xf32> -> vector<2x8x1xf32>
    %91 = vector.broadcast %90 : vector<2x8x1xf32> to vector<2x8x8xf32>
    %92 = arith.mulf %87, %91 : vector<2x8x8xf32>
    %93 = vector.broadcast %2 : vector<2x8x1xf32> to vector<2x8x8xf32>
    %94 = arith.mulf %92, %93 : vector<2x8x8xf32>
    %95 = arith.truncf %94 : vector<2x8x8xf32> to vector<2x8x8xbf16>
    %96 = vector.extract_strided_slice %25 {offsets = [0, 0, 16], sizes = [2, 8, 8], strides = [1, 1, 1]} : vector<2x8x32xbf16> to vector<2x8x8xbf16>
    "tpu.trace_start"() <{level = 10 : i32, message = "bts,bsd->btd"}> : () -> ()
    %cst_32 = arith.constant dense<0.000000e+00> : vector<2x8x8xf32>
    %97 = tpu.matmul %95, %96, %cst_32 {dimension_numbers = #tpu.dot_dimension_numbers<[2], [1], [1], [2], [0, 0, 0, 1, 1, 2], [0], [0]>} : vector<2x8x8xbf16>, vector<2x8x8xbf16>, vector<2x8x8xf32> -> vector<2x8x8xf32>
    "tpu.trace_stop"() : () -> ()
    %98 = vector.shape_cast %97 : vector<2x8x8xf32> to vector<16x8xf32>
    %99 = arith.truncf %98 : vector<16x8xf32> to vector<16x8xbf16>
    %100 = vector.extract_strided_slice %31 {offsets = [16, 0], sizes = [8, 32], strides = [1, 1]} : vector<32x32xbf16> to vector<8x32xbf16>
    %cst_33 = arith.constant dense<0.000000e+00> : vector<16x32xf32>
    %101 = tpu.matmul %99, %100, %cst_33 {dimension_numbers = #tpu.dot_dimension_numbers<[1], [0], [0], [1], [0, 0, 1, 1], [], []>} : vector<16x8xbf16>, vector<8x32xbf16>, vector<16x32xf32> -> vector<16x32xf32>
    %102 = arith.addf %78, %101 : vector<16x32xf32>
    %103 = vector.extract_strided_slice %19 {offsets = [0, 0, 24], sizes = [2, 8, 8], strides = [1, 1, 1]} : vector<2x8x32xbf16> to vector<2x8x8xbf16>
    %104 = vector.extract_strided_slice %22 {offsets = [0, 0, 24], sizes = [2, 8, 8], strides = [1, 1, 1]} : vector<2x8x32xbf16> to vector<2x8x8xbf16>
    "tpu.trace_start"() <{level = 10 : i32, message = "btd,bsd->bts"}> : () -> ()
    %cst_34 = arith.constant dense<0.000000e+00> : vector<2x8x8xf32>
    %105 = tpu.matmul %103, %104, %cst_34 {dimension_numbers = #tpu.dot_dimension_numbers<[2], [2], [1], [1], [0, 0, 0, 1, 1, 1], [0], [0]>} : vector<2x8x8xbf16>, vector<2x8x8xbf16>, vector<2x8x8xf32> -> vector<2x8x8xf32>
    "tpu.trace_stop"() : () -> ()
    %106 = arith.addf %105, %30 : vector<2x8x8xf32>
    %cst_35 = arith.constant dense<0xFF800000> : vector<2x8xf32>
    %107 = vector.multi_reduction <maximumf>, %106, %cst_35 [2] : vector<2x8x8xf32> to vector<2x8xf32>
    %108 = vector.shape_cast %107 : vector<2x8xf32> to vector<2x8x1xf32>
    %109 = vector.broadcast %108 : vector<2x8x1xf32> to vector<2x8x8xf32>
    %110 = arith.subf %106, %109 : vector<2x8x8xf32>
    %111 = math.exp %110 : vector<2x8x8xf32>
    %cst_36 = arith.constant dense<0.000000e+00> : vector<2x8xf32>
    %112 = vector.multi_reduction <add>, %111, %cst_36 [2] : vector<2x8x8xf32> to vector<2x8xf32>
    %113 = vector.shape_cast %112 : vector<2x8xf32> to vector<2x8x1xf32>
    %114 = tpu.reciprocal %113 {approx = true} : vector<2x8x1xf32> -> vector<2x8x1xf32>
    %115 = vector.broadcast %114 : vector<2x8x1xf32> to vector<2x8x8xf32>
    %116 = arith.mulf %111, %115 : vector<2x8x8xf32>
    %117 = vector.broadcast %2 : vector<2x8x1xf32> to vector<2x8x8xf32>
    %118 = arith.mulf %116, %117 : vector<2x8x8xf32>
    %119 = arith.truncf %118 : vector<2x8x8xf32> to vector<2x8x8xbf16>
    %120 = vector.extract_strided_slice %25 {offsets = [0, 0, 24], sizes = [2, 8, 8], strides = [1, 1, 1]} : vector<2x8x32xbf16> to vector<2x8x8xbf16>
    "tpu.trace_start"() <{level = 10 : i32, message = "bts,bsd->btd"}> : () -> ()
    %cst_37 = arith.constant dense<0.000000e+00> : vector<2x8x8xf32>
    %121 = tpu.matmul %119, %120, %cst_37 {dimension_numbers = #tpu.dot_dimension_numbers<[2], [1], [1], [2], [0, 0, 0, 1, 1, 2], [0], [0]>} : vector<2x8x8xbf16>, vector<2x8x8xbf16>, vector<2x8x8xf32> -> vector<2x8x8xf32>
    "tpu.trace_stop"() : () -> ()
    %122 = vector.shape_cast %121 : vector<2x8x8xf32> to vector<16x8xf32>
    %123 = arith.truncf %122 : vector<16x8xf32> to vector<16x8xbf16>
    %124 = vector.extract_strided_slice %31 {offsets = [24, 0], sizes = [8, 32], strides = [1, 1]} : vector<32x32xbf16> to vector<8x32xbf16>
    %cst_38 = arith.constant dense<0.000000e+00> : vector<16x32xf32>
    %125 = tpu.matmul %123, %124, %cst_38 {dimension_numbers = #tpu.dot_dimension_numbers<[1], [0], [0], [1], [0, 0, 1, 1], [], []>} : vector<16x8xbf16>, vector<8x32xbf16>, vector<16x32xf32> -> vector<16x32xf32>
    %126 = arith.addf %102, %125 : vector<16x32xf32>
    %127 = vector.shape_cast %47 : vector<2x8x8xf32> to vector<2x1x8x8xf32>
    %128 = vector.shape_cast %70 : vector<2x8x8xf32> to vector<2x1x8x8xf32>
    %129 = vector.shape_cast %94 : vector<2x8x8xf32> to vector<2x1x8x8xf32>
    %130 = vector.shape_cast %118 : vector<2x8x8xf32> to vector<2x1x8x8xf32>
    %131 = tpu.concatenate %127, %128, %129, %130 in 1 : vector<2x1x8x8xf32>, vector<2x1x8x8xf32>, vector<2x1x8x8xf32>, vector<2x1x8x8xf32> -> vector<2x4x8x8xf32>
    %c0_39 = arith.constant 0 : index
    %c0_40 = arith.constant 0 : index
    %c0_41 = arith.constant 0 : index
    %c0_42 = arith.constant 0 : index
    %132 = vector.load %arg12[%c0_39, %c0_40, %c0_41, %c0_42] : memref<2x4x8x8xf32, #tpu.memory_space<vmem>>, vector<2x4x8x8xf32>
    tpu.vector_store %arg12[%c0_39, %c0_40, %c0_41, %c0_42], %131 {strides = array<i32>} : memref<2x4x8x8xf32, #tpu.memory_space<vmem>>, vector<2x4x8x8xf32>,
    %133 = arith.addf %3, %126 : vector<16x32xf32>
    %134 = vector.broadcast %5 : vector<1x32xf32> to vector<16x32xf32>
    %135 = arith.addf %133, %134 : vector<16x32xf32>
    %cst_43 = arith.constant dense<0.000000e+00> : vector<16xf32>
    %136 = vector.multi_reduction <add>, %135, %cst_43 [1] : vector<16x32xf32> to vector<16xf32>
    %137 = vector.shape_cast %136 : vector<16xf32> to vector<16x1xf32>
    %cst_44 = arith.constant 3.200000e+01 : f32
    %138 = vector.broadcast %cst_44 : f32 to vector<16x1xf32>
    %139 = arith.divf %137, %138 : vector<16x1xf32>
    %140 = vector.broadcast %139 : vector<16x1xf32> to vector<16x32xf32>
    %141 = arith.subf %135, %140 : vector<16x32xf32>
    %142 = arith.mulf %141, %141 : vector<16x32xf32>
    %cst_45 = arith.constant dense<0.000000e+00> : vector<16xf32>
    %143 = vector.multi_reduction <add>, %142, %cst_45 [1] : vector<16x32xf32> to vector<16xf32>
    %144 = vector.shape_cast %143 : vector<16xf32> to vector<16x1xf32>
    %cst_46 = arith.constant 3.200000e+01 : f32
    %145 = vector.broadcast %cst_46 : f32 to vector<16x1xf32>
    %146 = arith.divf %144, %145 : vector<16x1xf32>
    %cst_47 = arith.constant 9.99999974E-6 : f32
    %147 = vector.broadcast %cst_47 : f32 to vector<16x1xf32>
    %148 = arith.addf %146, %147 : vector<16x1xf32>
    %149 = math.rsqrt %148 : vector<16x1xf32>
    %150 = vector.broadcast %149 : vector<16x1xf32> to vector<16x32xf32>
    %151 = arith.mulf %141, %150 : vector<16x32xf32>
    %152 = vector.broadcast %6 : vector<1x32xf32> to vector<16x32xf32>
    %153 = arith.mulf %151, %152 : vector<16x32xf32>
    %154 = vector.broadcast %7 : vector<1x32xf32> to vector<16x32xf32>
    %155 = arith.addf %153, %154 : vector<16x32xf32>
    %156 = arith.truncf %155 : vector<16x32xf32> to vector<16x32xbf16>
    %c0_48 = arith.constant 0 : index
    %c0_49 = arith.constant 0 : index
    %157 = vector.load %arg7[%c0_48, %c0_49] : memref<32x128xbf16, #tpu.memory_space<vmem>>, vector<32x128xbf16>
    %cst_50 = arith.constant dense<0.000000e+00> : vector<16x128xf32>
    %158 = tpu.matmul %156, %157, %cst_50 {dimension_numbers = #tpu.dot_dimension_numbers<[1], [0], [0], [1], [0, 0, 1, 1], [], []>} : vector<16x32xbf16>, vector<32x128xbf16>, vector<16x128xf32> -> vector<16x128xf32>
    %c0_51 = arith.constant 0 : index
    %c0_52 = arith.constant 0 : index
    %159 = vector.load %arg8[%c0_51, %c0_52] : memref<1x128xf32, #tpu.memory_space<vmem>>, vector<1x128xf32>
    %160 = vector.broadcast %159 : vector<1x128xf32> to vector<16x128xf32>
    %161 = arith.addf %158, %160 : vector<16x128xf32>
    %cst_53 = arith.constant 0.000000e+00 : f32
    %162 = vector.broadcast %cst_53 : f32 to vector<16x128xf32>
    %163 = arith.maximumf %161, %162 : vector<16x128xf32>
    %164 = arith.truncf %163 : vector<16x128xf32> to vector<16x128xbf16>
    %c0_54 = arith.constant 0 : index
    %c0_55 = arith.constant 0 : index
    %165 = vector.load %arg9[%c0_54, %c0_55] : memref<128x32xbf16, #tpu.memory_space<vmem>>, vector<128x32xbf16>
    %cst_56 = arith.constant dense<0.000000e+00> : vector<16x32xf32>
    %166 = tpu.matmul %164, %165, %cst_56 {dimension_numbers = #tpu.dot_dimension_numbers<[1], [0], [0], [1], [0, 0, 1, 1], [], []>} : vector<16x128xbf16>, vector<128x32xbf16>, vector<16x32xf32> -> vector<16x32xf32>
    %167 = vector.broadcast %8 : vector<1x32xf32> to vector<16x32xf32>
    %168 = arith.addf %166, %167 : vector<16x32xf32>
    %169 = arith.addf %155, %168 : vector<16x32xf32>
    %170 = vector.shape_cast %2 : vector<2x8x1xf32> to vector<16x1xf32>
    %171 = vector.broadcast %170 : vector<16x1xf32> to vector<16x32xf32>
    %172 = arith.mulf %169, %171 : vector<16x32xf32>
    %cst_57 = arith.constant dense<0.000000e+00> : vector<16xf32>
    %173 = vector.multi_reduction <add>, %172, %cst_57 [1] : vector<16x32xf32> to vector<16xf32>
    %174 = vector.shape_cast %173 : vector<16xf32> to vector<16x1xf32>
    %cst_58 = arith.constant 3.200000e+01 : f32
    %175 = vector.broadcast %cst_58 : f32 to vector<16x1xf32>
    %176 = arith.divf %174, %175 : vector<16x1xf32>
    %177 = vector.broadcast %176 : vector<16x1xf32> to vector<16x32xf32>
    %178 = arith.subf %172, %177 : vector<16x32xf32>
    %179 = arith.mulf %178, %178 : vector<16x32xf32>
    %cst_59 = arith.constant dense<0.000000e+00> : vector<16xf32>
    %180 = vector.multi_reduction <add>, %179, %cst_59 [1] : vector<16x32xf32> to vector<16xf32>
    %181 = vector.shape_cast %180 : vector<16xf32> to vector<16x1xf32>
    %cst_60 = arith.constant 3.200000e+01 : f32
    %182 = vector.broadcast %cst_60 : f32 to vector<16x1xf32>
    %183 = arith.divf %181, %182 : vector<16x1xf32>
    %cst_61 = arith.constant 9.99999974E-6 : f32
    %184 = vector.broadcast %cst_61 : f32 to vector<16x1xf32>
    %185 = arith.addf %183, %184 : vector<16x1xf32>
    %186 = math.rsqrt %185 : vector<16x1xf32>
    %187 = vector.broadcast %186 : vector<16x1xf32> to vector<16x32xf32>
    %188 = arith.mulf %178, %187 : vector<16x32xf32>
    %189 = vector.broadcast %9 : vector<1x32xf32> to vector<16x32xf32>
    %190 = arith.mulf %188, %189 : vector<16x32xf32>
    %191 = vector.broadcast %10 : vector<1x32xf32> to vector<16x32xf32>
    %192 = arith.addf %190, %191 : vector<16x32xf32>
    %193 = vector.shape_cast %192 : vector<16x32xf32> to vector<2x8x32xf32>
    %c0_62 = arith.constant 0 : index
    %c0_63 = arith.constant 0 : index
    %c0_64 = arith.constant 0 : index
    %194 = vector.load %arg11[%c0_62, %c0_63, %c0_64] : memref<2x8x32xf32, #tpu.memory_space<vmem>>, vector<2x8x32xf32>
    tpu.vector_store %arg11[%c0_62, %c0_63, %c0_64], %193 {strides = array<i32>} : memref<2x8x32xf32, #tpu.memory_space<vmem>>, vector<2x8x32xf32>,
    return
  }
  func.func @transform_0(%arg0: i32) -> (i32, i32, i32) {
    %c0_i32 = arith.constant 0 : i32
    %c0_i32_0 = arith.constant 0 : i32
    %c0_i32_1 = arith.constant 0 : i32
    return %arg0, %c0_i32, %c0_i32_0 : i32, i32, i32
  }
  func.func @transform_1(%arg0: i32) -> (i32, i32, i32) {
    %c0_i32 = arith.constant 0 : i32
    %c0_i32_0 = arith.constant 0 : i32
    %c0_i32_1 = arith.constant 0 : i32
    return %arg0, %c0_i32, %c0_i32_0 : i32, i32, i32
  }
  func.func @transform_2(%arg0: i32) -> (i32, i32, i32) {
    %c0_i32 = arith.constant 0 : i32
    %c0_i32_0 = arith.constant 0 : i32
    %c0_i32_1 = arith.constant 0 : i32
    return %arg0, %c0_i32, %c0_i32_0 : i32, i32, i32
  }
  func.func @transform_3(%arg0: i32) -> (i32, i32) {
    %c0_i32 = arith.constant 0 : i32
    %c0_i32_0 = arith.constant 0 : i32
    %c0_i32_1 = arith.constant 0 : i32
    return %c0_i32, %c0_i32_0 : i32, i32
  }
  func.func @transform_4(%arg0: i32) -> (i32, i32) {
    %c0_i32 = arith.constant 0 : i32
    %c0_i32_0 = arith.constant 0 : i32
    %c0_i32_1 = arith.constant 0 : i32
    return %c0_i32, %c0_i32_0 : i32, i32
  }
  func.func @transform_5(%arg0: i32) -> (i32, i32) {
    %c0_i32 = arith.constant 0 : i32
    %c0_i32_0 = arith.constant 0 : i32
    %c0_i32_1 = arith.constant 0 : i32
    return %c0_i32, %c0_i32_0 : i32, i32
  }
  func.func @transform_6(%arg0: i32) -> (i32, i32) {
    %c0_i32 = arith.constant 0 : i32
    %c0_i32_0 = arith.constant 0 : i32
    %c0_i32_1 = arith.constant 0 : i32
    return %c0_i32, %c0_i32_0 : i32, i32
  }
  func.func @transform_7(%arg0: i32) -> (i32, i32) {
    %c0_i32 = arith.constant 0 : i32
    %c0_i32_0 = arith.constant 0 : i32
    %c0_i32_1 = arith.constant 0 : i32
    return %c0_i32, %c0_i32_0 : i32, i32
  }
  func.func @transform_8(%arg0: i32) -> (i32, i32) {
    %c0_i32 = arith.constant 0 : i32
    %c0_i32_0 = arith.constant 0 : i32
    %c0_i32_1 = arith.constant 0 : i32
    return %c0_i32, %c0_i32_0 : i32, i32
  }
  func.func @transform_9(%arg0: i32) -> (i32, i32) {
    %c0_i32 = arith.constant 0 : i32
    %c0_i32_0 = arith.constant 0 : i32
    %c0_i32_1 = arith.constant 0 : i32
    return %c0_i32, %c0_i32_0 : i32, i32
  }
  func.func @transform_10(%arg0: i32) -> (i32, i32, i32) {
    %c0_i32 = arith.constant 0 : i32
    %c0_i32_0 = arith.constant 0 : i32
    %c0_i32_1 = arith.constant 0 : i32
    return %arg0, %c0_i32, %c0_i32_0 : i32, i32, i32
  }
  func.func @transform_11(%arg0: i32) -> (i32, i32, i32, i32) {
    %c0_i32 = arith.constant 0 : i32
    %c0_i32_0 = arith.constant 0 : i32
    %c0_i32_1 = arith.constant 0 : i32
    %c0_i32_2 = arith.constant 0 : i32
    return %arg0, %c0_i32, %c0_i32_0, %c0_i32_1 : i32, i32, i32, i32
  }
}

</mosaic_0001>

<llo_original>
// kernel: tpu_custom_call.1
$region0: #{tpu_custom_call.1}
  #allocation0 [shape = 'u32[]', space=smem, size = 0x4, offset = 0x4, fixed_abs, tag = 'smem constant byte address 0x4 - core index']
  #allocation1 [shape = 'u32[144,128]{1,0:T(1,128)}', space=vmem, size = 0x12000, scoped, tag = 'internal scratch']
  %s0 = inlined_call_operand.vmem [shape: f32[2,8,32], index: 0, kind: input, shape index: {}]
  %s1 = inlined_call_operand.vmem [shape: f32[2,8,8], index: 1, kind: input, shape index: {}]
  %s2 = inlined_call_operand.vmem [shape: f32[2,8,1], index: 2, kind: input, shape index: {}]
  %s3 = inlined_call_operand.vmem [shape: bf16[32,96], index: 3, kind: input, shape index: {}]
  %s4 = inlined_call_operand.vmem [shape: f32[1,96], index: 4, kind: input, shape index: {}]
  %s5 = inlined_call_operand.vmem [shape: bf16[32,32], index: 5, kind: input, shape index: {}]
  %s6 = inlined_call_operand.vmem [shape: bf16[32,128], index: 6, kind: input, shape index: {}]
  %s7 = inlined_call_operand.vmem [shape: f32[1,128], index: 7, kind: input, shape index: {}]
  %s8 = inlined_call_operand.vmem [shape: bf16[128,32], index: 8, kind: input, shape index: {}]
  %s9 = inlined_call_operand.vmem [shape: f32[6,32], index: 9, kind: input, shape index: {}]
  %s10 = inlined_call_operand.hbm [shape: f32[2,8,32], index: 10, kind: output, shape index: {0}]
  %s11 = inlined_call_operand.hbm [shape: f32[2,4,8,8], index: 11, kind: output, shape index: {1}]
  %12 = xla_tuple %s10, %s11
  %s13 = sld [smem:[#allocation0]]
  $region58: #{tpu_custom_call.1} parent=0
    _
  %s15 = ssub.s32 1, %s13
  %s16 = scalar_select 0, %s15, %s13
  $region1: #{tpu_custom_call.1} parent=0
    #allocation2 [shape = 'u8[8192]{0}', space=vmem, size = 0x2000, scoped, tag = 'output window, operand 0, single buffered']
    #allocation3 [shape = 's32[1]{0}', space=sflag, size = 0x4, scoped, tag = 'scoped memory for tpu_custom_call.1']
    #allocation4 [shape = 'u8[32768]{0}', space=vmem, size = 0x8000, scoped, tag = 'output window, operand 1, single buffered']
    #allocation5 [shape = 's32[1]{0}', space=sflag, size = 0x4, scoped, tag = 'scoped memory for tpu_custom_call.1']
    %17 = vsyncpa [#allocation3], 0
    %18 = vsyncpa [#allocation5], 0
    // Predicated region
    $region2: #{tpu_custom_call.1} parent=1 // pred_check
      _
    $region3: #{tpu_custom_call.1} parent=1 // pred_check_branch
      %20 = sbr.rel (0) target = $region5
    $region4: #{tpu_custom_call.1} parent=1 // pred_region
      _
    $region5: #{tpu_custom_call.1} parent=1 // pred_fallthru
      _
    // Predicated region
    $region6: #{tpu_custom_call.1} parent=1 // pred_check
      _
    $region7: #{tpu_custom_call.1} parent=1 // pred_check_branch
      %22 = sbr.rel (0) target = $region9
    $region8: #{tpu_custom_call.1} parent=1 // pred_region
      _
    $region9: #{tpu_custom_call.1} parent=1 // pred_fallthru
      _
    // Predicated region
    $region10: #{tpu_custom_call.1} parent=1 // pred_check
      _
    $region11: #{tpu_custom_call.1} parent=1 // pred_check_branch
      %24 = sbr.rel (0) target = $region13
    $region12: #{tpu_custom_call.1} parent=1 // pred_region
      _
    $region13: #{tpu_custom_call.1} parent=1 // pred_fallthru
      _
    // Predicated region
    $region14: #{tpu_custom_call.1} parent=1 // pred_check
      _
    $region15: #{tpu_custom_call.1} parent=1 // pred_check_branch
      %26 = sbr.rel (0) target = $region17
    $region16: #{tpu_custom_call.1} parent=1 // pred_region
      _
    $region17: #{tpu_custom_call.1} parent=1 // pred_fallthru
      _
    // Predicated region
    $region18: #{tpu_custom_call.1} parent=1 // pred_check
      _
    $region19: #{tpu_custom_call.1} parent=1 // pred_check_branch
      %28 = sbr.rel (0) target = $region21
    $region20: #{tpu_custom_call.1} parent=1 // pred_region
      _
    $region21: #{tpu_custom_call.1} parent=1 // pred_fallthru
      _
    // Predicated region
    $region22: #{tpu_custom_call.1} parent=1 // pred_check
      _
    $region23: #{tpu_custom_call.1} parent=1 // pred_check_branch
      %30 = sbr.rel (0) target = $region25
    $region24: #{tpu_custom_call.1} parent=1 // pred_region
      _
    $region25: #{tpu_custom_call.1} parent=1 // pred_fallthru
      _
    // Predicated region
    $region26: #{tpu_custom_call.1} parent=1 // pred_check
      _
    $region27: #{tpu_custom_call.1} parent=1 // pred_check_branch
      %32 = sbr.rel (0) target = $region29
    $region28: #{tpu_custom_call.1} parent=1 // pred_region
      _
    $region29: #{tpu_custom_call.1} parent=1 // pred_fallthru
      _
    // Predicated region
    $region30: #{tpu_custom_call.1} parent=1 // pred_check
      _
    $region31: #{tpu_custom_call.1} parent=1 // pred_check_branch
      %34 = sbr.rel (0) target = $region33
    $region32: #{tpu_custom_call.1} parent=1 // pred_region
      _
    $region33: #{tpu_custom_call.1} parent=1 // pred_fallthru
      _
    // Predicated region
    $region34: #{tpu_custom_call.1} parent=1 // pred_check
      _
    $region35: #{tpu_custom_call.1} parent=1 // pred_check_branch
      %36 = sbr.rel (0) target = $region37
    $region36: #{tpu_custom_call.1} parent=1 // pred_region
      _
    $region37: #{tpu_custom_call.1} parent=1 // pred_fallthru
      _
    // Predicated region
    $region38: #{tpu_custom_call.1} parent=1 // pred_check
      _
    $region39: #{tpu_custom_call.1} parent=1 // pred_check_branch
      %38 = sbr.rel (0) target = $region41
    $region40: #{tpu_custom_call.1} parent=1 // pred_region
      _
    $region41: #{tpu_custom_call.1} parent=1 // pred_fallthru
      _
    %v40 = vld [vmem:[%s0] sm:$0xff]
    %v41 = vld [vmem:[%s0 + $0x8] sm:$0xff]
    %v42 = vld [vmem:[%s1] sm:$0xff]
    %v43 = vld [vmem:[%s1 + $0x8] sm:$0xff]
    %v44 = vld [vmem:[%s2] sm:$0xff]
    %v45 = vld [vmem:[%s2 + $0x8] sm:$0xff]
    %v46 = vld [vmem:[%s9] sm:$0x3f]
    %v47 = vpack.c.bf16 %v41, %v40
    %v48 = vld [vmem:[%s3] sm:$0xf]
    %v49 = vld [vmem:[%s3 + $0x4] sm:$0xf]
    %v50 = vld [vmem:[%s3 + $0x8] sm:$0xf]
    %v51 = vld [vmem:[%s3 + $0xc] sm:$0xf]
    %v52 = vld [vmem:[%s4] sm:$0x1]
    %v54 = vlaneseq
    %v55 = vshrl.u32 %v54, 7
    %v56 = vsub.s32 0, %v55
    %v57 = vrot.slane %v52, %v56
    %v63 = vunpack.c.l.b16 %v48
    %v64 = vunpack.c.l.b16 %v49
    %v65 = vunpack.c.l.b16 %v50
    %v66 = vunpack.c.l.b16 %v51
    %v67 = vpack.c.b16 %v64, %v63
    %v68 = vpack.c.b16 %v66, %v65
    %vm71 = vcmask 261120
    %v73 = vsel %vm71, %v47, 0
    %75 = vmatprep.subr.bf16.mxu0 0
    %76 = vmatpush1.bf16.msra.mxu0 %v67
    %77 = vmatprep.subr.bf16.mxu0 0
    %78 = vmatpush1.bf16.msra.mxu0 %v68
    %79 = vmatprep.subr.bf16.mxu0 0
    %80 = vmatpush1.bf16.msra.mxu0 0
    %81 = vmatprep.subr.bf16.mxu0 0
    %82 = vmatpush1.bf16.msra.mxu0 0
    %83 = vmatprep.subr.bf16.mxu0 0
    %84 = vmatpush1.bf16.msra.mxu0 0
    %85 = vmatprep.subr.bf16.mxu0 0
    %86 = vmatpush1.bf16.msra.mxu0 0
    %87 = vmatprep.subr.bf16.mxu0 0
    %88 = vmatpush1.bf16.msra.mxu0 0
    %89 = vmatprep.subr.bf16.mxu0 0
    %90 = vmatpush1.bf16.msra.mxu0 0
    %91 = vmatprep.subr.bf16.mxu0 0
    %92 = vmatpush1.bf16.msra.mxu0 0
    %93 = vmatprep.subr.bf16.mxu0 0
    %94 = vmatpush1.bf16.msra.mxu0 0
    %95 = vmatprep.subr.bf16.mxu0 0
    %96 = vmatpush1.bf16.msra.mxu0 0
    %97 = vmatprep.subr.bf16.mxu0 0
    %98 = vmatpush1.bf16.msra.mxu0 0
    %99 = vmatprep.subr.bf16.mxu0 0
    %100 = vmatpush1.bf16.msra.mxu0 0
    %101 = vmatprep.subr.bf16.mxu0 0
    %102 = vmatpush1.bf16.msra.mxu0 0
    %103 = vmatprep.subr.bf16.mxu0 0
    %104 = vmatpush1.bf16.msra.mxu0 0
    %105 = vmatprep.subr.bf16.mxu0 0
    %106 = vmatpush1.bf16.msra.mxu0 0
    %107 = vmatprep.mubr.bf16.mxu0 0
    %108 = vmatmul.mubr.bf16.gmra.mrb[0].mxu0 %v73
    %v109 = vpop.f32.mrb[0].mxu0
    %v110 = vadd.f32 %v57, %v109
    %v111 = vpop.f32.mrb[0].mxu0
    %v112 = vpop.f32.mrb[0].mxu0
    %v113 = vadd.f32 %v57, %v112
    %v114 = vpop.f32.mrb[0].mxu0
    %115 = vdwg.mxu0
    %v116 = vpack.c.bf16 %v110, %v110
    %v117 = vpack.c.bf16 %v113, %v113
    %vm118 = vcmp.gt.f32.partialorder %v42, 0.0
    %vm119 = vcmp.gt.f32.partialorder %v43, 0.0
    %v120 = vsel %vm118, 0.0, -1e+09
    %v121 = vsel %vm119, 0.0, -1e+09
    %v122 = vld [vmem:[%s5] sm:$0xf]
    %v123 = vld [vmem:[%s5 + $0x4] sm:$0xf]
    %v124 = vld [vmem:[%s5 + $0x8] sm:$0xf]
    %v125 = vld [vmem:[%s5 + $0xc] sm:$0xf]
    %127 = vrot.lane.b32.xlu0 %v116, 96
    %v128 = vpop.permute.xlu0 %127
    %vm129 = vcmask 64512
    %v131 = vsel %vm129, %v116, 0
    %v134 = vsel %vm129, %v128, 0
    %136 = vmatprep.subr.bf16.mxu0 0
    %137 = vmatpush1.bf16.xpose.msra.mxu0 %v134
    %138 = vmatprep.subr.bf16.mxu0 0
    %139 = vmatpush1.bf16.xpose.msra.mxu0 0
    %140 = vmatprep.subr.bf16.mxu0 0
    %141 = vmatpush1.bf16.xpose.msra.mxu0 0
    %142 = vmatprep.subr.bf16.mxu0 0
    %143 = vmatpush1.bf16.xpose.msra.mxu0 0
    %144 = vmatprep.subr.bf16.mxu0 0
    %145 = vmatpush1.bf16.xpose.msra.mxu0 0
    %146 = vmatprep.subr.bf16.mxu0 0
    %147 = vmatpush1.bf16.xpose.msra.mxu0 0
    %148 = vmatprep.subr.bf16.mxu0 0
    %149 = vmatpush1.bf16.xpose.msra.mxu0 0
    %150 = vmatprep.subr.bf16.mxu0 0
    %151 = vmatpush1.bf16.xpose.msra.mxu0 0
    %152 = vmatprep.subr.bf16.mxu0 0
    %153 = vmatpush1.bf16.xpose.msra.mxu0 0
    %154 = vmatprep.subr.bf16.mxu0 0
    %155 = vmatpush1.bf16.xpose.msra.mxu0 0
    %156 = vmatprep.subr.bf16.mxu0 0
    %157 = vmatpush1.bf16.xpose.msra.mxu0 0
    %158 = vmatprep.subr.bf16.mxu0 0
    %159 = vmatpush1.bf16.xpose.msra.mxu0 0
    %160 = vmatprep.subr.bf16.mxu0 0
    %161 = vmatpush1.bf16.xpose.msra.mxu0 0
    %162 = vmatprep.subr.bf16.mxu0 0
    %163 = vmatpush1.bf16.xpose.msra.mxu0 0
    %164 = vmatprep.subr.bf16.mxu0 0
    %165 = vmatpush1.bf16.xpose.msra.mxu0 0
    %166 = vmatprep.subr.bf16.mxu0 0
    %167 = vmatpush1.bf16.xpose.msra.mxu0 0
    %168 = vmatprep.mubr.bf16.mxu0 0
    %169 = vmatmul.mubr.bf16.gmra.mrb[0].mxu0 %v131
    %v170 = vpop.f32.mrb[0].mxu0
    %v171 = vadd.f32 %v120, %v170
    %v172 = vpop.f32.mrb[0].mxu0
    %v173 = vpop.f32.mrb[0].mxu0
    %v174 = vpop.f32.mrb[0].mxu0
    %175 = vdwg.mxu0
    %177 = vrot.lane.b32.xlu0 %v117, 96
    %v178 = vpop.permute.xlu0 %177
    %v180 = vsel %vm129, %v117, 0
    %v183 = vsel %vm129, %v178, 0
    %185 = vmatprep.subr.bf16.mxu0 0
    %186 = vmatpush1.bf16.xpose.msra.mxu0 %v183
    %187 = vmatprep.subr.bf16.mxu0 0
    %188 = vmatpush1.bf16.xpose.msra.mxu0 0
    %189 = vmatprep.subr.bf16.mxu0 0
    %190 = vmatpush1.bf16.xpose.msra.mxu0 0
    %191 = vmatprep.subr.bf16.mxu0 0
    %192 = vmatpush1.bf16.xpose.msra.mxu0 0
    %193 = vmatprep.subr.bf16.mxu0 0
    %194 = vmatpush1.bf16.xpose.msra.mxu0 0
    %195 = vmatprep.subr.bf16.mxu0 0
    %196 = vmatpush1.bf16.xpose.msra.mxu0 0
    %197 = vmatprep.subr.bf16.mxu0 0
    %198 = vmatpush1.bf16.xpose.msra.mxu0 0
    %199 = vmatprep.subr.bf16.mxu0 0
    %200 = vmatpush1.bf16.xpose.msra.mxu0 0
    %201 = vmatprep.subr.bf16.mxu0 0
    %202 = vmatpush1.bf16.xpose.msra.mxu0 0
    %203 = vmatprep.subr.bf16.mxu0 0
    %204 = vmatpush1.bf16.xpose.msra.mxu0 0
    %205 = vmatprep.subr.bf16.mxu0 0
    %206 = vmatpush1.bf16.xpose.msra.mxu0 0
    %207 = vmatprep.subr.bf16.mxu0 0
    %208 = vmatpush1.bf16.xpose.msra.mxu0 0
    %209 = vmatprep.subr.bf16.mxu0 0
    %210 = vmatpush1.bf16.xpose.msra.mxu0 0
    %211 = vmatprep.subr.bf16.mxu0 0
    %212 = vmatpush1.bf16.xpose.msra.mxu0 0
    %213 = vmatprep.subr.bf16.mxu0 0
    %214 = vmatpush1.bf16.xpose.msra.mxu0 0
    %215 = vmatprep.subr.bf16.mxu0 0
    %216 = vmatpush1.bf16.xpose.msra.mxu0 0
    %217 = vmatprep.mubr.bf16.mxu0 0
    %218 = vmatmul.mubr.bf16.gmra.mrb[0].mxu0 %v180
    %v219 = vpop.f32.mrb[0].mxu0
    %v220 = vadd.f32 %v121, %v219
    %v221 = vpop.f32.mrb[0].mxu0
    %v222 = vpop.f32.mrb[0].mxu0
    %v223 = vpop.f32.mrb[0].mxu0
    %224 = vdwg.mxu0
    %v225 = vsel %vm129, %v171, -inf
    %226 = vmax.xlane.f32.xlu0 %v225
    %v227 = vpop.xlane.xlu0 %226
    %v228 = vsel %vm129, %v220, -inf
    %229 = vmax.xlane.f32.xlu0 %v228
    %v230 = vpop.xlane.xlu0 %229
    %v231 = vsub.f32 %v171, %v227
    %v232 = vsub.f32 %v220, %v230
    %v233 = vmul.f32 %v231, 1.442695
    %v234 = vpow.pop %v233
    %v235 = vmul.f32 %v232, 1.442695
    %v236 = vpow.pop %v235
    %v237 = vsel %vm129, %v234, 0.0
    %238 = vadd.xlane.f32.xlu0 %v237
    %v239 = vpop.xlane.xlu0 %238
    %v240 = vsel %vm129, %v236, 0.0
    %241 = vadd.xlane.f32.xlu0 %v240
    %v242 = vpop.xlane.xlu0 %241
    %v243 = vrcp.pop %v239
    %v244 = vrcp.pop %v242
    %v245 = vmul.f32 %v234, %v243
    %v246 = vmul.f32 %v236, %v244
    %248 = vset.pattern.permute.xlu0 0
    %249 = vperm.xlu0 %248, %v44
    %v250 = vpop.permute.xlu0 %249
    %253 = vset.pattern.permute.xlu0 0
    %254 = vperm.xlu0 %253, %v45
    %v255 = vpop.permute.xlu0 %254
    %v257 = vmul.f32 %v245, %v250
    %v258 = vmul.f32 %v246, %v255
    %v259 = vpack.c.bf16 %v257, %v257
    %v260 = vpack.c.bf16 %v258, %v258
    %261 = vrot.lane.b32.xlu0 %v116, 64
    %v262 = vpop.permute.xlu0 %261
    %v264 = vsel %vm129, %v259, 0
    %vm266 = vcmask 1043456
    %v268 = vsel %vm266, %v262, 0
    %270 = vmatprep.subr.bf16.mxu0 0
    %271 = vmatpush1.bf16.msra.mxu0 %v268
    %272 = vmatprep.subr.bf16.mxu0 0
    %273 = vmatpush1.bf16.msra.mxu0 0
    %274 = vmatprep.subr.bf16.mxu0 0
    %275 = vmatpush1.bf16.msra.mxu0 0
    %276 = vmatprep.subr.bf16.mxu0 0
    %277 = vmatpush1.bf16.msra.mxu0 0
    %278 = vmatprep.subr.bf16.mxu0 0
    %279 = vmatpush1.bf16.msra.mxu0 0
    %280 = vmatprep.subr.bf16.mxu0 0
    %281 = vmatpush1.bf16.msra.mxu0 0
    %282 = vmatprep.subr.bf16.mxu0 0
    %283 = vmatpush1.bf16.msra.mxu0 0
    %284 = vmatprep.subr.bf16.mxu0 0
    %285 = vmatpush1.bf16.msra.mxu0 0
    %286 = vmatprep.subr.bf16.mxu0 0
    %287 = vmatpush1.bf16.msra.mxu0 0
    %288 = vmatprep.subr.bf16.mxu0 0
    %289 = vmatpush1.bf16.msra.mxu0 0
    %290 = vmatprep.subr.bf16.mxu0 0
    %291 = vmatpush1.bf16.msra.mxu0 0
    %292 = vmatprep.subr.bf16.mxu0 0
    %293 = vmatpush1.bf16.msra.mxu0 0
    %294 = vmatprep.subr.bf16.mxu0 0
    %295 = vmatpush1.bf16.msra.mxu0 0
    %296 = vmatprep.subr.bf16.mxu0 0
    %297 = vmatpush1.bf16.msra.mxu0 0
    %298 = vmatprep.subr.bf16.mxu0 0
    %299 = vmatpush1.bf16.msra.mxu0 0
    %300 = vmatprep.subr.bf16.mxu0 0
    %301 = vmatpush1.bf16.msra.mxu0 0
    %302 = vmatprep.mubr.bf16.mxu0 0
    %303 = vmatmul.mubr.bf16.gmra.mrb[0].mxu0 %v264
    %v304 = vpop.f32.mrb[0].mxu0
    %v305 = vadd.f32 0.0, %v304
    %v306 = vpop.f32.mrb[0].mxu0
    %v307 = vpop.f32.mrb[0].mxu0
    %v308 = vpop.f32.mrb[0].mxu0
    %309 = vdwg.mxu0
    %310 = vrot.lane.b32.xlu0 %v117, 64
    %v311 = vpop.permute.xlu0 %310
    %v313 = vsel %vm129, %v260, 0
    %v316 = vsel %vm266, %v311, 0
    %318 = vmatprep.subr.bf16.mxu0 0
    %319 = vmatpush1.bf16.msra.mxu0 %v316
    %320 = vmatprep.subr.bf16.mxu0 0
    %321 = vmatpush1.bf16.msra.mxu0 0
    %322 = vmatprep.subr.bf16.mxu0 0
    %323 = vmatpush1.bf16.msra.mxu0 0
    %324 = vmatprep.subr.bf16.mxu0 0
    %325 = vmatpush1.bf16.msra.mxu0 0
    %326 = vmatprep.subr.bf16.mxu0 0
    %327 = vmatpush1.bf16.msra.mxu0 0
    %328 = vmatprep.subr.bf16.mxu0 0
    %329 = vmatpush1.bf16.msra.mxu0 0
    %330 = vmatprep.subr.bf16.mxu0 0
    %331 = vmatpush1.bf16.msra.mxu0 0
    %332 = vmatprep.subr.bf16.mxu0 0
    %333 = vmatpush1.bf16.msra.mxu0 0
    %334 = vmatprep.subr.bf16.mxu0 0
    %335 = vmatpush1.bf16.msra.mxu0 0
    %336 = vmatprep.subr.bf16.mxu0 0
    %337 = vmatpush1.bf16.msra.mxu0 0
    %338 = vmatprep.subr.bf16.mxu0 0
    %339 = vmatpush1.bf16.msra.mxu0 0
    %340 = vmatprep.subr.bf16.mxu0 0
    %341 = vmatpush1.bf16.msra.mxu0 0
    %342 = vmatprep.subr.bf16.mxu0 0
    %343 = vmatpush1.bf16.msra.mxu0 0
    %344 = vmatprep.subr.bf16.mxu0 0
    %345 = vmatpush1.bf16.msra.mxu0 0
    %346 = vmatprep.subr.bf16.mxu0 0
    %347 = vmatpush1.bf16.msra.mxu0 0
    %348 = vmatprep.subr.bf16.mxu0 0
    %349 = vmatpush1.bf16.msra.mxu0 0
    %350 = vmatprep.mubr.bf16.mxu0 0
    %351 = vmatmul.mubr.bf16.gmra.mrb[0].mxu0 %v313
    %v352 = vpop.f32.mrb[0].mxu0
    %v353 = vadd.f32 0.0, %v352
    %v354 = vpop.f32.mrb[0].mxu0
    %v355 = vpop.f32.mrb[0].mxu0
    %v356 = vpop.f32.mrb[0].mxu0
    %357 = vdwg.mxu0
    %v358 = vpack.c.bf16 %v353, %v305
    %359 = vrot.lane.b32.xlu0 %v116, 120
    %v360 = vpop.permute.xlu0 %359
    %361 = vrot.lane.b32.xlu0 %v116, 88
    %v362 = vpop.permute.xlu0 %361
    %v364 = vsel %vm129, %v360, 0
    %v367 = vsel %vm129, %v362, 0
    %369 = vmatprep.subr.bf16.mxu0 0
    %370 = vmatpush1.bf16.xpose.msra.mxu0 %v367
    %371 = vmatprep.subr.bf16.mxu0 0
    %372 = vmatpush1.bf16.xpose.msra.mxu0 0
    %373 = vmatprep.subr.bf16.mxu0 0
    %374 = vmatpush1.bf16.xpose.msra.mxu0 0
    %375 = vmatprep.subr.bf16.mxu0 0
    %376 = vmatpush1.bf16.xpose.msra.mxu0 0
    %377 = vmatprep.subr.bf16.mxu0 0
    %378 = vmatpush1.bf16.xpose.msra.mxu0 0
    %379 = vmatprep.subr.bf16.mxu0 0
    %380 = vmatpush1.bf16.xpose.msra.mxu0 0
    %381 = vmatprep.subr.bf16.mxu0 0
    %382 = vmatpush1.bf16.xpose.msra.mxu0 0
    %383 = vmatprep.subr.bf16.mxu0 0
    %384 = vmatpush1.bf16.xpose.msra.mxu0 0
    %385 = vmatprep.subr.bf16.mxu0 0
    %386 = vmatpush1.bf16.xpose.msra.mxu0 0
    %387 = vmatprep.subr.bf16.mxu0 0
    %388 = vmatpush1.bf16.xpose.msra.mxu0 0
    %389 = vmatprep.subr.bf16.mxu0 0
    %390 = vmatpush1.bf16.xpose.msra.mxu0 0
    %391 = vmatprep.subr.bf16.mxu0 0
    %392 = vmatpush1.bf16.xpose.msra.mxu0 0
    %393 = vmatprep.subr.bf16.mxu0 0
    %394 = vmatpush1.bf16.xpose.msra.mxu0 0
    %395 = vmatprep.subr.bf16.mxu0 0
    %396 = vmatpush1.bf16.xpose.msra.mxu0 0
    %397 = vmatprep.subr.bf16.mxu0 0
    %398 = vmatpush1.bf16.xpose.msra.mxu0 0
    %399 = vmatprep.subr.bf16.mxu0 0
    %400 = vmatpush1.bf16.xpose.msra.mxu0 0
    %401 = vmatprep.mubr.bf16.mxu0 0
    %402 = vmatmul.mubr.bf16.gmra.mrb[0].mxu0 %v364
    %v403 = vpop.f32.mrb[0].mxu0
    %v404 = vadd.f32 %v120, %v403
    %v405 = vpop.f32.mrb[0].mxu0
    %v406 = vpop.f32.mrb[0].mxu0
    %v407 = vpop.f32.mrb[0].mxu0
    %408 = vdwg.mxu0
    %409 = vrot.lane.b32.xlu0 %v117, 120
    %v410 = vpop.permute.xlu0 %409
    %411 = vrot.lane.b32.xlu0 %v117, 88
    %v412 = vpop.permute.xlu0 %411
    %v414 = vsel %vm129, %v410, 0
    %v417 = vsel %vm129, %v412, 0
    %419 = vmatprep.subr.bf16.mxu0 0
    %420 = vmatpush1.bf16.xpose.msra.mxu0 %v417
    %421 = vmatprep.subr.bf16.mxu0 0
    %422 = vmatpush1.bf16.xpose.msra.mxu0 0
    %423 = vmatprep.subr.bf16.mxu0 0
    %424 = vmatpush1.bf16.xpose.msra.mxu0 0
    %425 = vmatprep.subr.bf16.mxu0 0
    %426 = vmatpush1.bf16.xpose.msra.mxu0 0
    %427 = vmatprep.subr.bf16.mxu0 0
    %428 = vmatpush1.bf16.xpose.msra.mxu0 0
    %429 = vmatprep.subr.bf16.mxu0 0
    %430 = vmatpush1.bf16.xpose.msra.mxu0 0
    %431 = vmatprep.subr.bf16.mxu0 0
    %432 = vmatpush1.bf16.xpose.msra.mxu0 0
    %433 = vmatprep.subr.bf16.mxu0 0
    %434 = vmatpush1.bf16.xpose.msra.mxu0 0
    %435 = vmatprep.subr.bf16.mxu0 0
    %436 = vmatpush1.bf16.xpose.msra.mxu0 0
    %437 = vmatprep.subr.bf16.mxu0 0
    %438 = vmatpush1.bf16.xpose.msra.mxu0 0
    %439 = vmatprep.subr.bf16.mxu0 0
    %440 = vmatpush1.bf16.xpose.msra.mxu0 0
    %441 = vmatprep.subr.bf16.mxu0 0
    %442 = vmatpush1.bf16.xpose.msra.mxu0 0
    %443 = vmatprep.subr.bf16.mxu0 0
    %444 = vmatpush1.bf16.xpose.msra.mxu0 0
    %445 = vmatprep.subr.bf16.mxu0 0
    %446 = vmatpush1.bf16.xpose.msra.mxu0 0
    %447 = vmatprep.subr.bf16.mxu0 0
    %448 = vmatpush1.bf16.xpose.msra.mxu0 0
    %449 = vmatprep.subr.bf16.mxu0 0
    %450 = vmatpush1.bf16.xpose.msra.mxu0 0
    %451 = vmatprep.mubr.bf16.mxu0 0
    %452 = vmatmul.mubr.bf16.gmra.mrb[0].mxu0 %v414
    %v453 = vpop.f32.mrb[0].mxu0
    %v454 = vadd.f32 %v121, %v453
    %v455 = vpop.f32.mrb[0].mxu0
    %v456 = vpop.f32.mrb[0].mxu0
    %v457 = vpop.f32.mrb[0].mxu0
    %458 = vdwg.mxu0
    %v459 = vsel %vm129, %v404, -inf
    %460 = vmax.xlane.f32.xlu0 %v459
    %v461 = vpop.xlane.xlu0 %460
    %v462 = vsel %vm129, %v454, -inf
    %463 = vmax.xlane.f32.xlu0 %v462
    %v464 = vpop.xlane.xlu0 %463
    %v465 = vsub.f32 %v404, %v461
    %v466 = vsub.f32 %v454, %v464
    %v467 = vmul.f32 %v465, 1.442695
    %v468 = vpow.pop %v467
    %v469 = vmul.f32 %v466, 1.442695
    %v470 = vpow.pop %v469
    %v471 = vsel %vm129, %v468, 0.0
    %472 = vadd.xlane.f32.xlu0 %v471
    %v473 = vpop.xlane.xlu0 %472
    %v474 = vsel %vm129, %v470, 0.0
    %475 = vadd.xlane.f32.xlu0 %v474
    %v476 = vpop.xlane.xlu0 %475
    %v477 = vrcp.pop %v473
    %v478 = vrcp.pop %v476
    %v479 = vmul.f32 %v468, %v477
    %v480 = vmul.f32 %v470, %v478
    %v481 = vmul.f32 %v479, %v250
    %v482 = vmul.f32 %v480, %v255
    %v483 = vpack.c.bf16 %v481, %v481
    %v484 = vpack.c.bf16 %v482, %v482
    %485 = vrot.lane.b32.xlu0 %v116, 56
    %v486 = vpop.permute.xlu0 %485
    %v488 = vsel %vm129, %v483, 0
    %v491 = vsel %vm266, %v486, 0
    %493 = vmatprep.subr.bf16.mxu0 0
    %494 = vmatpush1.bf16.msra.mxu0 %v491
    %495 = vmatprep.subr.bf16.mxu0 0
    %496 = vmatpush1.bf16.msra.mxu0 0
    %497 = vmatprep.subr.bf16.mxu0 0
    %498 = vmatpush1.bf16.msra.mxu0 0
    %499 = vmatprep.subr.bf16.mxu0 0
    %500 = vmatpush1.bf16.msra.mxu0 0
    %501 = vmatprep.subr.bf16.mxu0 0
    %502 = vmatpush1.bf16.msra.mxu0 0
    %503 = vmatprep.subr.bf16.mxu0 0
    %504 = vmatpush1.bf16.msra.mxu0 0
    %505 = vmatprep.subr.bf16.mxu0 0
    %506 = vmatpush1.bf16.msra.mxu0 0
    %507 = vmatprep.subr.bf16.mxu0 0
    %508 = vmatpush1.bf16.msra.mxu0 0
    %509 = vmatprep.subr.bf16.mxu0 0
    %510 = vmatpush1.bf16.msra.mxu0 0
    %511 = vmatprep.subr.bf16.mxu0 0
    %512 = vmatpush1.bf16.msra.mxu0 0
    %513 = vmatprep.subr.bf16.mxu0 0
    %514 = vmatpush1.bf16.msra.mxu0 0
    %515 = vmatprep.subr.bf16.mxu0 0
    %516 = vmatpush1.bf16.msra.mxu0 0
    %517 = vmatprep.subr.bf16.mxu0 0
    %518 = vmatpush1.bf16.msra.mxu0 0
    %519 = vmatprep.subr.bf16.mxu0 0
    %520 = vmatpush1.bf16.msra.mxu0 0
    %521 = vmatprep.subr.bf16.mxu0 0
    %522 = vmatpush1.bf16.msra.mxu0 0
    %523 = vmatprep.subr.bf16.mxu0 0
    %524 = vmatpush1.bf16.msra.mxu0 0
    %525 = vmatprep.mubr.bf16.mxu0 0
    %526 = vmatmul.mubr.bf16.gmra.mrb[0].mxu0 %v488
    %v527 = vpop.f32.mrb[0].mxu0
    %v528 = vadd.f32 0.0, %v527
    %v529 = vpop.f32.mrb[0].mxu0
    %v530 = vpop.f32.mrb[0].mxu0
    %v531 = vpop.f32.mrb[0].mxu0
    %532 = vdwg.mxu0
    %533 = vrot.lane.b32.xlu0 %v117, 56
    %v534 = vpop.permute.xlu0 %533
    %v536 = vsel %vm129, %v484, 0
    %v539 = vsel %vm266, %v534, 0
    %541 = vmatprep.subr.bf16.mxu0 0
    %542 = vmatpush1.bf16.msra.mxu0 %v539
    %543 = vmatprep.subr.bf16.mxu0 0
    %544 = vmatpush1.bf16.msra.mxu0 0
    %545 = vmatprep.subr.bf16.mxu0 0
    %546 = vmatpush1.bf16.msra.mxu0 0
    %547 = vmatprep.subr.bf16.mxu0 0
    %548 = vmatpush1.bf16.msra.mxu0 0
    %549 = vmatprep.subr.bf16.mxu0 0
    %550 = vmatpush1.bf16.msra.mxu0 0
    %551 = vmatprep.subr.bf16.mxu0 0
    %552 = vmatpush1.bf16.msra.mxu0 0
    %553 = vmatprep.subr.bf16.mxu0 0
    %554 = vmatpush1.bf16.msra.mxu0 0
    %555 = vmatprep.subr.bf16.mxu0 0
    %556 = vmatpush1.bf16.msra.mxu0 0
    %557 = vmatprep.subr.bf16.mxu0 0
    %558 = vmatpush1.bf16.msra.mxu0 0
    %559 = vmatprep.subr.bf16.mxu0 0
    %560 = vmatpush1.bf16.msra.mxu0 0
    %561 = vmatprep.subr.bf16.mxu0 0
    %562 = vmatpush1.bf16.msra.mxu0 0
    %563 = vmatprep.subr.bf16.mxu0 0
    %564 = vmatpush1.bf16.msra.mxu0 0
    %565 = vmatprep.subr.bf16.mxu0 0
    %566 = vmatpush1.bf16.msra.mxu0 0
    %567 = vmatprep.subr.bf16.mxu0 0
    %568 = vmatpush1.bf16.msra.mxu0 0
    %569 = vmatprep.subr.bf16.mxu0 0
    %570 = vmatpush1.bf16.msra.mxu0 0
    %571 = vmatprep.subr.bf16.mxu0 0
    %572 = vmatpush1.bf16.msra.mxu0 0
    %573 = vmatprep.mubr.bf16.mxu0 0
    %574 = vmatmul.mubr.bf16.gmra.mrb[0].mxu0 %v536
    %v575 = vpop.f32.mrb[0].mxu0
    %v576 = vadd.f32 0.0, %v575
    %v577 = vpop.f32.mrb[0].mxu0
    %v578 = vpop.f32.mrb[0].mxu0
    %v579 = vpop.f32.mrb[0].mxu0
    %580 = vdwg.mxu0
    %v581 = vpack.c.bf16 %v576, %v528
    %v583 = vsel %vm129, %v581, 0
    %v586 = vsel %vm266, %v123, 0
    %588 = vmatprep.subr.bf16.mxu0 0
    %589 = vmatpush1.bf16.msra.mxu0 %v586
    %590 = vmatprep.subr.bf16.mxu0 0
    %591 = vmatpush1.bf16.msra.mxu0 0
    %592 = vmatprep.subr.bf16.mxu0 0
    %593 = vmatpush1.bf16.msra.mxu0 0
    %594 = vmatprep.subr.bf16.mxu0 0
    %595 = vmatpush1.bf16.msra.mxu0 0
    %596 = vmatprep.subr.bf16.mxu0 0
    %597 = vmatpush1.bf16.msra.mxu0 0
    %598 = vmatprep.subr.bf16.mxu0 0
    %599 = vmatpush1.bf16.msra.mxu0 0
    %600 = vmatprep.subr.bf16.mxu0 0
    %601 = vmatpush1.bf16.msra.mxu0 0
    %602 = vmatprep.subr.bf16.mxu0 0
    %603 = vmatpush1.bf16.msra.mxu0 0
    %604 = vmatprep.subr.bf16.mxu0 0
    %605 = vmatpush1.bf16.msra.mxu0 0
    %606 = vmatprep.subr.bf16.mxu0 0
    %607 = vmatpush1.bf16.msra.mxu0 0
    %608 = vmatprep.subr.bf16.mxu0 0
    %609 = vmatpush1.bf16.msra.mxu0 0
    %610 = vmatprep.subr.bf16.mxu0 0
    %611 = vmatpush1.bf16.msra.mxu0 0
    %612 = vmatprep.subr.bf16.mxu0 0
    %613 = vmatpush1.bf16.msra.mxu0 0
    %614 = vmatprep.subr.bf16.mxu0 0
    %615 = vmatpush1.bf16.msra.mxu0 0
    %616 = vmatprep.subr.bf16.mxu0 0
    %617 = vmatpush1.bf16.msra.mxu0 0
    %618 = vmatprep.subr.bf16.mxu0 0
    %619 = vmatpush1.bf16.msra.mxu0 0
    %620 = vmatprep.mubr.bf16.mxu0 0
    %621 = vmatmul.mubr.bf16.gmra.mrb[0].mxu0 %v583
    %v622 = vpop.f32.mrb[0].mxu0
    %v623 = vadd.f32 0.0, %v622
    %v624 = vpop.f32.mrb[0].mxu0
    %v625 = vpop.f32.mrb[0].mxu0
    %v626 = vadd.f32 0.0, %v625
    %v627 = vpop.f32.mrb[0].mxu0
    %628 = vdwg.mxu0
    %v630 = vsel %vm129, %v358, 0
    %v633 = vsel %vm266, %v122, 0
    %635 = vmatprep.subr.bf16.mxu0 0
    %636 = vmatpush1.bf16.msra.mxu0 %v633
    %637 = vmatprep.subr.bf16.mxu0 0
    %638 = vmatpush1.bf16.msra.mxu0 0
    %639 = vmatprep.subr.bf16.mxu0 0
    %640 = vmatpush1.bf16.msra.mxu0 0
    %641 = vmatprep.subr.bf16.mxu0 0
    %642 = vmatpush1.bf16.msra.mxu0 0
    %643 = vmatprep.subr.bf16.mxu0 0
    %644 = vmatpush1.bf16.msra.mxu0 0
    %645 = vmatprep.subr.bf16.mxu0 0
    %646 = vmatpush1.bf16.msra.mxu0 0
    %647 = vmatprep.subr.bf16.mxu0 0
    %648 = vmatpush1.bf16.msra.mxu0 0
    %649 = vmatprep.subr.bf16.mxu0 0
    %650 = vmatpush1.bf16.msra.mxu0 0
    %651 = vmatprep.subr.bf16.mxu0 0
    %652 = vmatpush1.bf16.msra.mxu0 0
    %653 = vmatprep.subr.bf16.mxu0 0
    %654 = vmatpush1.bf16.msra.mxu0 0
    %655 = vmatprep.subr.bf16.mxu0 0
    %656 = vmatpush1.bf16.msra.mxu0 0
    %657 = vmatprep.subr.bf16.mxu0 0
    %658 = vmatpush1.bf16.msra.mxu0 0
    %659 = vmatprep.subr.bf16.mxu0 0
    %660 = vmatpush1.bf16.msra.mxu0 0
    %661 = vmatprep.subr.bf16.mxu0 0
    %662 = vmatpush1.bf16.msra.mxu0 0
    %663 = vmatprep.subr.bf16.mxu0 0
    %664 = vmatpush1.bf16.msra.mxu0 0
    %665 = vmatprep.subr.bf16.mxu0 0
    %666 = vmatpush1.bf16.msra.mxu0 0
    %667 = vmatprep.mubr.bf16.mxu0 0
    %668 = vmatmul.mubr.bf16.gmra.mrb[0].mxu0 %v630
    %v669 = vpop.f32.mrb[0].mxu0
    %v670 = vadd.f32 %v623, %v669
    %v671 = vpop.f32.mrb[0].mxu0
    %v672 = vpop.f32.mrb[0].mxu0
    %v673 = vadd.f32 %v626, %v672
    %v674 = vpop.f32.mrb[0].mxu0
    %675 = vdwg.mxu0
    %676 = vrot.lane.b32.xlu0 %v116, 112
    %v677 = vpop.permute.xlu0 %676
    %678 = vrot.lane.b32.xlu0 %v116, 80
    %v679 = vpop.permute.xlu0 %678
    %v681 = vsel %vm129, %v677, 0
    %v684 = vsel %vm129, %v679, 0
    %686 = vmatprep.subr.bf16.mxu0 0
    %687 = vmatpush1.bf16.xpose.msra.mxu0 %v684
    %688 = vmatprep.subr.bf16.mxu0 0
    %689 = vmatpush1.bf16.xpose.msra.mxu0 0
    %690 = vmatprep.subr.bf16.mxu0 0
    %691 = vmatpush1.bf16.xpose.msra.mxu0 0
    %692 = vmatprep.subr.bf16.mxu0 0
    %693 = vmatpush1.bf16.xpose.msra.mxu0 0
    %694 = vmatprep.subr.bf16.mxu0 0
    %695 = vmatpush1.bf16.xpose.msra.mxu0 0
    %696 = vmatprep.subr.bf16.mxu0 0
    %697 = vmatpush1.bf16.xpose.msra.mxu0 0
    %698 = vmatprep.subr.bf16.mxu0 0
    %699 = vmatpush1.bf16.xpose.msra.mxu0 0
    %700 = vmatprep.subr.bf16.mxu0 0
    %701 = vmatpush1.bf16.xpose.msra.mxu0 0
    %702 = vmatprep.subr.bf16.mxu0 0
    %703 = vmatpush1.bf16.xpose.msra.mxu0 0
    %704 = vmatprep.subr.bf16.mxu0 0
    %705 = vmatpush1.bf16.xpose.msra.mxu0 0
    %706 = vmatprep.subr.bf16.mxu0 0
    %707 = vmatpush1.bf16.xpose.msra.mxu0 0
    %708 = vmatprep.subr.bf16.mxu0 0
    %709 = vmatpush1.bf16.xpose.msra.mxu0 0
    %710 = vmatprep.subr.bf16.mxu0 0
    %711 = vmatpush1.bf16.xpose.msra.mxu0 0
    %712 = vmatprep.subr.bf16.mxu0 0
    %713 = vmatpush1.bf16.xpose.msra.mxu0 0
    %714 = vmatprep.subr.bf16.mxu0 0
    %715 = vmatpush1.bf16.xpose.msra.mxu0 0
    %716 = vmatprep.subr.bf16.mxu0 0
    %717 = vmatpush1.bf16.xpose.msra.mxu0 0
    %718 = vmatprep.mubr.bf16.mxu0 0
    %719 = vmatmul.mubr.bf16.gmra.mrb[0].mxu0 %v681
    %v720 = vpop.f32.mrb[0].mxu0
    %v721 = vadd.f32 %v120, %v720
    %v722 = vpop.f32.mrb[0].mxu0
    %v723 = vpop.f32.mrb[0].mxu0
    %v724 = vpop.f32.mrb[0].mxu0
    %725 = vdwg.mxu0
    %726 = vrot.lane.b32.xlu0 %v117, 112
    %v727 = vpop.permute.xlu0 %726
    %728 = vrot.lane.b32.xlu0 %v117, 80
    %v729 = vpop.permute.xlu0 %728
    %v731 = vsel %vm129, %v727, 0
    %v734 = vsel %vm129, %v729, 0
    %736 = vmatprep.subr.bf16.mxu0 0
    %737 = vmatpush1.bf16.xpose.msra.mxu0 %v734
    %738 = vmatprep.subr.bf16.mxu0 0
    %739 = vmatpush1.bf16.xpose.msra.mxu0 0
    %740 = vmatprep.subr.bf16.mxu0 0
    %741 = vmatpush1.bf16.xpose.msra.mxu0 0
    %742 = vmatprep.subr.bf16.mxu0 0
    %743 = vmatpush1.bf16.xpose.msra.mxu0 0
    %744 = vmatprep.subr.bf16.mxu0 0
    %745 = vmatpush1.bf16.xpose.msra.mxu0 0
    %746 = vmatprep.subr.bf16.mxu0 0
    %747 = vmatpush1.bf16.xpose.msra.mxu0 0
    %748 = vmatprep.subr.bf16.mxu0 0
    %749 = vmatpush1.bf16.xpose.msra.mxu0 0
    %750 = vmatprep.subr.bf16.mxu0 0
    %751 = vmatpush1.bf16.xpose.msra.mxu0 0
    %752 = vmatprep.subr.bf16.mxu0 0
    %753 = vmatpush1.bf16.xpose.msra.mxu0 0
    %754 = vmatprep.subr.bf16.mxu0 0
    %755 = vmatpush1.bf16.xpose.msra.mxu0 0
    %756 = vmatprep.subr.bf16.mxu0 0
    %757 = vmatpush1.bf16.xpose.msra.mxu0 0
    %758 = vmatprep.subr.bf16.mxu0 0
    %759 = vmatpush1.bf16.xpose.msra.mxu0 0
    %760 = vmatprep.subr.bf16.mxu0 0
    %761 = vmatpush1.bf16.xpose.msra.mxu0 0
    %762 = vmatprep.subr.bf16.mxu0 0
    %763 = vmatpush1.bf16.xpose.msra.mxu0 0
    %764 = vmatprep.subr.bf16.mxu0 0
    %765 = vmatpush1.bf16.xpose.msra.mxu0 0
    %766 = vmatprep.subr.bf16.mxu0 0
    %767 = vmatpush1.bf16.xpose.msra.mxu0 0
    %768 = vmatprep.mubr.bf16.mxu0 0
    %769 = vmatmul.mubr.bf16.gmra.mrb[0].mxu0 %v731
    %v770 = vpop.f32.mrb[0].mxu0
    %v771 = vadd.f32 %v121, %v770
    %v772 = vpop.f32.mrb[0].mxu0
    %v773 = vpop.f32.mrb[0].mxu0
    %v774 = vpop.f32.mrb[0].mxu0
    %775 = vdwg.mxu0
    %v776 = vsel %vm129, %v721, -inf
    %777 = vmax.xlane.f32.xlu0 %v776
    %v778 = vpop.xlane.xlu0 %777
    %v779 = vsel %vm129, %v771, -inf
    %780 = vmax.xlane.f32.xlu0 %v779
    %v781 = vpop.xlane.xlu0 %780
    %v782 = vsub.f32 %v721, %v778
    %v783 = vsub.f32 %v771, %v781
    %v784 = vmul.f32 %v782, 1.442695
    %v785 = vpow.pop %v784
    %v786 = vmul.f32 %v783, 1.442695
    %v787 = vpow.pop %v786
    %v788 = vsel %vm129, %v785, 0.0
    %789 = vadd.xlane.f32.xlu0 %v788
    %v790 = vpop.xlane.xlu0 %789
    %v791 = vsel %vm129, %v787, 0.0
    %792 = vadd.xlane.f32.xlu0 %v791
    %v793 = vpop.xlane.xlu0 %792
    %v794 = vrcp.pop %v790
    %v795 = vrcp.pop %v793
    %v796 = vmul.f32 %v785, %v794
    %v797 = vmul.f32 %v787, %v795
    %v798 = vmul.f32 %v796, %v250
    %v799 = vmul.f32 %v797, %v255
    %v800 = vpack.c.bf16 %v798, %v798
    %v801 = vpack.c.bf16 %v799, %v799
    %802 = vrot.lane.b32.xlu0 %v116, 48
    %v803 = vpop.permute.xlu0 %802
    %v805 = vsel %vm129, %v800, 0
    %v808 = vsel %vm266, %v803, 0
    %810 = vmatprep.subr.bf16.mxu0 0
    %811 = vmatpush1.bf16.msra.mxu0 %v808
    %812 = vmatprep.subr.bf16.mxu0 0
    %813 = vmatpush1.bf16.msra.mxu0 0
    %814 = vmatprep.subr.bf16.mxu0 0
    %815 = vmatpush1.bf16.msra.mxu0 0
    %816 = vmatprep.subr.bf16.mxu0 0
    %817 = vmatpush1.bf16.msra.mxu0 0
    %818 = vmatprep.subr.bf16.mxu0 0
    %819 = vmatpush1.bf16.msra.mxu0 0
    %820 = vmatprep.subr.bf16.mxu0 0
    %821 = vmatpush1.bf16.msra.mxu0 0
    %822 = vmatprep.subr.bf16.mxu0 0
    %823 = vmatpush1.bf16.msra.mxu0 0
    %824 = vmatprep.subr.bf16.mxu0 0
    %825 = vmatpush1.bf16.msra.mxu0 0
    %826 = vmatprep.subr.bf16.mxu0 0
    %827 = vmatpush1.bf16.msra.mxu0 0
    %828 = vmatprep.subr.bf16.mxu0 0
    %829 = vmatpush1.bf16.msra.mxu0 0
    %830 = vmatprep.subr.bf16.mxu0 0
    %831 = vmatpush1.bf16.msra.mxu0 0
    %832 = vmatprep.subr.bf16.mxu0 0
    %833 = vmatpush1.bf16.msra.mxu0 0
    %834 = vmatprep.subr.bf16.mxu0 0
    %835 = vmatpush1.bf16.msra.mxu0 0
    %836 = vmatprep.subr.bf16.mxu0 0
    %837 = vmatpush1.bf16.msra.mxu0 0
    %838 = vmatprep.subr.bf16.mxu0 0
    %839 = vmatpush1.bf16.msra.mxu0 0
    %840 = vmatprep.subr.bf16.mxu0 0
    %841 = vmatpush1.bf16.msra.mxu0 0
    %842 = vmatprep.mubr.bf16.mxu0 0
    %843 = vmatmul.mubr.bf16.gmra.mrb[0].mxu0 %v805
    %v844 = vpop.f32.mrb[0].mxu0
    %v845 = vadd.f32 0.0, %v844
    %v846 = vpop.f32.mrb[0].mxu0
    %v847 = vpop.f32.mrb[0].mxu0
    %v848 = vpop.f32.mrb[0].mxu0
    %849 = vdwg.mxu0
    %850 = vrot.lane.b32.xlu0 %v117, 48
    %v851 = vpop.permute.xlu0 %850
    %v853 = vsel %vm129, %v801, 0
    %v856 = vsel %vm266, %v851, 0
    %858 = vmatprep.subr.bf16.mxu0 0
    %859 = vmatpush1.bf16.msra.mxu0 %v856
    %860 = vmatprep.subr.bf16.mxu0 0
    %861 = vmatpush1.bf16.msra.mxu0 0
    %862 = vmatprep.subr.bf16.mxu0 0
    %863 = vmatpush1.bf16.msra.mxu0 0
    %864 = vmatprep.subr.bf16.mxu0 0
    %865 = vmatpush1.bf16.msra.mxu0 0
    %866 = vmatprep.subr.bf16.mxu0 0
    %867 = vmatpush1.bf16.msra.mxu0 0
    %868 = vmatprep.subr.bf16.mxu0 0
    %869 = vmatpush1.bf16.msra.mxu0 0
    %870 = vmatprep.subr.bf16.mxu0 0
    %871 = vmatpush1.bf16.msra.mxu0 0
    %872 = vmatprep.subr.bf16.mxu0 0
    %873 = vmatpush1.bf16.msra.mxu0 0
    %874 = vmatprep.subr.bf16.mxu0 0
    %875 = vmatpush1.bf16.msra.mxu0 0
    %876 = vmatprep.subr.bf16.mxu0 0
    %877 = vmatpush1.bf16.msra.mxu0 0
    %878 = vmatprep.subr.bf16.mxu0 0
    %879 = vmatpush1.bf16.msra.mxu0 0
    %880 = vmatprep.subr.bf16.mxu0 0
    %881 = vmatpush1.bf16.msra.mxu0 0
    %882 = vmatprep.subr.bf16.mxu0 0
    %883 = vmatpush1.bf16.msra.mxu0 0
    %884 = vmatprep.subr.bf16.mxu0 0
    %885 = vmatpush1.bf16.msra.mxu0 0
    %886 = vmatprep.subr.bf16.mxu0 0
    %887 = vmatpush1.bf16.msra.mxu0 0
    %888 = vmatprep.subr.bf16.mxu0 0
    %889 = vmatpush1.bf16.msra.mxu0 0
    %890 = vmatprep.mubr.bf16.mxu0 0
    %891 = vmatmul.mubr.bf16.gmra.mrb[0].mxu0 %v853
    %v892 = vpop.f32.mrb[0].mxu0
    %v893 = vadd.f32 0.0, %v892
    %v894 = vpop.f32.mrb[0].mxu0
    %v895 = vpop.f32.mrb[0].mxu0
    %v896 = vpop.f32.mrb[0].mxu0
    %897 = vdwg.mxu0
    %v898 = vpack.c.bf16 %v893, %v845
    %v900 = vsel %vm129, %v898, 0
    %v903 = vsel %vm266, %v124, 0
    %905 = vmatprep.subr.bf16.mxu0 0
    %906 = vmatpush1.bf16.msra.mxu0 %v903
    %907 = vmatprep.subr.bf16.mxu0 0
    %908 = vmatpush1.bf16.msra.mxu0 0
    %909 = vmatprep.subr.bf16.mxu0 0
    %910 = vmatpush1.bf16.msra.mxu0 0
    %911 = vmatprep.subr.bf16.mxu0 0
    %912 = vmatpush1.bf16.msra.mxu0 0
    %913 = vmatprep.subr.bf16.mxu0 0
    %914 = vmatpush1.bf16.msra.mxu0 0
    %915 = vmatprep.subr.bf16.mxu0 0
    %916 = vmatpush1.bf16.msra.mxu0 0
    %917 = vmatprep.subr.bf16.mxu0 0
    %918 = vmatpush1.bf16.msra.mxu0 0
    %919 = vmatprep.subr.bf16.mxu0 0
    %920 = vmatpush1.bf16.msra.mxu0 0
    %921 = vmatprep.subr.bf16.mxu0 0
    %922 = vmatpush1.bf16.msra.mxu0 0
    %923 = vmatprep.subr.bf16.mxu0 0
    %924 = vmatpush1.bf16.msra.mxu0 0
    %925 = vmatprep.subr.bf16.mxu0 0
    %926 = vmatpush1.bf16.msra.mxu0 0
    %927 = vmatprep.subr.bf16.mxu0 0
    %928 = vmatpush1.bf16.msra.mxu0 0
    %929 = vmatprep.subr.bf16.mxu0 0
    %930 = vmatpush1.bf16.msra.mxu0 0
    %931 = vmatprep.subr.bf16.mxu0 0
    %932 = vmatpush1.bf16.msra.mxu0 0
    %933 = vmatprep.subr.bf16.mxu0 0
    %934 = vmatpush1.bf16.msra.mxu0 0
    %935 = vmatprep.subr.bf16.mxu0 0
    %936 = vmatpush1.bf16.msra.mxu0 0
    %937 = vmatprep.mubr.bf16.mxu0 0
    %938 = vmatmul.mubr.bf16.gmra.mrb[0].mxu0 %v900
    %v939 = vpop.f32.mrb[0].mxu0
    %v940 = vadd.f32 0.0, %v939
    %v941 = vpop.f32.mrb[0].mxu0
    %v942 = vpop.f32.mrb[0].mxu0
    %v943 = vadd.f32 0.0, %v942
    %v944 = vpop.f32.mrb[0].mxu0
    %945 = vdwg.mxu0
    %v946 = vadd.f32 %v670, %v940
    %v947 = vadd.f32 %v673, %v943
    %948 = vrot.lane.b32.xlu0 %v116, 104
    %v949 = vpop.permute.xlu0 %948
    %950 = vrot.lane.b32.xlu0 %v116, 72
    %v951 = vpop.permute.xlu0 %950
    %v953 = vsel %vm129, %v949, 0
    %v956 = vsel %vm129, %v951, 0
    %958 = vmatprep.subr.bf16.mxu0 0
    %959 = vmatpush1.bf16.xpose.msra.mxu0 %v956
    %960 = vmatprep.subr.bf16.mxu0 0
    %961 = vmatpush1.bf16.xpose.msra.mxu0 0
    %962 = vmatprep.subr.bf16.mxu0 0
    %963 = vmatpush1.bf16.xpose.msra.mxu0 0
    %964 = vmatprep.subr.bf16.mxu0 0
    %965 = vmatpush1.bf16.xpose.msra.mxu0 0
    %966 = vmatprep.subr.bf16.mxu0 0
    %967 = vmatpush1.bf16.xpose.msra.mxu0 0
    %968 = vmatprep.subr.bf16.mxu0 0
    %969 = vmatpush1.bf16.xpose.msra.mxu0 0
    %970 = vmatprep.subr.bf16.mxu0 0
    %971 = vmatpush1.bf16.xpose.msra.mxu0 0
    %972 = vmatprep.subr.bf16.mxu0 0
    %973 = vmatpush1.bf16.xpose.msra.mxu0 0
    %974 = vmatprep.subr.bf16.mxu0 0
    %975 = vmatpush1.bf16.xpose.msra.mxu0 0
    %976 = vmatprep.subr.bf16.mxu0 0
    %977 = vmatpush1.bf16.xpose.msra.mxu0 0
    %978 = vmatprep.subr.bf16.mxu0 0
    %979 = vmatpush1.bf16.xpose.msra.mxu0 0
    %980 = vmatprep.subr.bf16.mxu0 0
    %981 = vmatpush1.bf16.xpose.msra.mxu0 0
    %982 = vmatprep.subr.bf16.mxu0 0
    %983 = vmatpush1.bf16.xpose.msra.mxu0 0
    %984 = vmatprep.subr.bf16.mxu0 0
    %985 = vmatpush1.bf16.xpose.msra.mxu0 0
    %986 = vmatprep.subr.bf16.mxu0 0
    %987 = vmatpush1.bf16.xpose.msra.mxu0 0
    %988 = vmatprep.subr.bf16.mxu0 0
    %989 = vmatpush1.bf16.xpose.msra.mxu0 0
    %990 = vmatprep.mubr.bf16.mxu0 0
    %991 = vmatmul.mubr.bf16.gmra.mrb[0].mxu0 %v953
    %v992 = vpop.f32.mrb[0].mxu0
    %v993 = vadd.f32 %v120, %v992
    %v994 = vpop.f32.mrb[0].mxu0
    %v995 = vpop.f32.mrb[0].mxu0
    %v996 = vpop.f32.mrb[0].mxu0
    %997 = vdwg.mxu0
    %998 = vrot.lane.b32.xlu0 %v117, 104
    %v999 = vpop.permute.xlu0 %998
    %1000 = vrot.lane.b32.xlu0 %v117, 72
    %v1001 = vpop.permute.xlu0 %1000
    %v1003 = vsel %vm129, %v999, 0
    %v1006 = vsel %vm129, %v1001, 0
    %1008 = vmatprep.subr.bf16.mxu0 0
    %1009 = vmatpush1.bf16.xpose.msra.mxu0 %v1006
    %1010 = vmatprep.subr.bf16.mxu0 0
    %1011 = vmatpush1.bf16.xpose.msra.mxu0 0
    %1012 = vmatprep.subr.bf16.mxu0 0
    %1013 = vmatpush1.bf16.xpose.msra.mxu0 0
    %1014 = vmatprep.subr.bf16.mxu0 0
    %1015 = vmatpush1.bf16.xpose.msra.mxu0 0
    %1016 = vmatprep.subr.bf16.mxu0 0
    %1017 = vmatpush1.bf16.xpose.msra.mxu0 0
    %1018 = vmatprep.subr.bf16.mxu0 0
    %1019 = vmatpush1.bf16.xpose.msra.mxu0 0
    %1020 = vmatprep.subr.bf16.mxu0 0
    %1021 = vmatpush1.bf16.xpose.msra.mxu0 0
    %1022 = vmatprep.subr.bf16.mxu0 0
    %1023 = vmatpush1.bf16.xpose.msra.mxu0 0
    %1024 = vmatprep.subr.bf16.mxu0 0
    %1025 = vmatpush1.bf16.xpose.msra.mxu0 0
    %1026 = vmatprep.subr.bf16.mxu0 0
    %1027 = vmatpush1.bf16.xpose.msra.mxu0 0
    %1028 = vmatprep.subr.bf16.mxu0 0
    %1029 = vmatpush1.bf16.xpose.msra.mxu0 0
    %1030 = vmatprep.subr.bf16.mxu0 0
    %1031 = vmatpush1.bf16.xpose.msra.mxu0 0
    %1032 = vmatprep.subr.bf16.mxu0 0
    %1033 = vmatpush1.bf16.xpose.msra.mxu0 0
    %1034 = vmatprep.subr.bf16.mxu0 0
    %1035 = vmatpush1.bf16.xpose.msra.mxu0 0
    %1036 = vmatprep.subr.bf16.mxu0 0
    %1037 = vmatpush1.bf16.xpose.msra.mxu0 0
    %1038 = vmatprep.subr.bf16.mxu0 0
    %1039 = vmatpush1.bf16.xpose.msra.mxu0 0
    %1040 = vmatprep.mubr.bf16.mxu0 0
    %1041 = vmatmul.mubr.bf16.gmra.mrb[0].mxu0 %v1003
    %v1042 = vpop.f32.mrb[0].mxu0
    %v1043 = vadd.f32 %v121, %v1042
    %v1044 = vpop.f32.mrb[0].mxu0
    %v1045 = vpop.f32.mrb[0].mxu0
    %v1046 = vpop.f32.mrb[0].mxu0
    %1047 = vdwg.mxu0
    %v1048 = vsel %vm129, %v993, -inf
    %1049 = vmax.xlane.f32.xlu0 %v1048
    %v1050 = vpop.xlane.xlu0 %1049
    %v1051 = vsel %vm129, %v1043, -inf
    %1052 = vmax.xlane.f32.xlu0 %v1051
    %v1053 = vpop.xlane.xlu0 %1052
    %v1054 = vsub.f32 %v993, %v1050
    %v1055 = vsub.f32 %v1043, %v1053
    %v1056 = vmul.f32 %v1054, 1.442695
    %v1057 = vpow.pop %v1056
    %v1058 = vmul.f32 %v1055, 1.442695
    %v1059 = vpow.pop %v1058
    %v1060 = vsel %vm129, %v1057, 0.0
    %1061 = vadd.xlane.f32.xlu0 %v1060
    %v1062 = vpop.xlane.xlu0 %1061
    %v1063 = vsel %vm129, %v1059, 0.0
    %1064 = vadd.xlane.f32.xlu0 %v1063
    %v1065 = vpop.xlane.xlu0 %1064
    %v1066 = vrcp.pop %v1062
    %v1067 = vrcp.pop %v1065
    %v1068 = vmul.f32 %v1057, %v1066
    %v1069 = vmul.f32 %v1059, %v1067
    %v1070 = vmul.f32 %v1068, %v250
    %v1071 = vmul.f32 %v1069, %v255
    %v1072 = vpack.c.bf16 %v1070, %v1070
    %v1073 = vpack.c.bf16 %v1071, %v1071
    %1074 = vrot.lane.b32.xlu0 %v116, 40
    %v1075 = vpop.permute.xlu0 %1074
    %v1077 = vsel %vm129, %v1072, 0
    %v1080 = vsel %vm266, %v1075, 0
    %1082 = vmatprep.subr.bf16.mxu0 0
    %1083 = vmatpush1.bf16.msra.mxu0 %v1080
    %1084 = vmatprep.subr.bf16.mxu0 0
    %1085 = vmatpush1.bf16.msra.mxu0 0
    %1086 = vmatprep.subr.bf16.mxu0 0
    %1087 = vmatpush1.bf16.msra.mxu0 0
    %1088 = vmatprep.subr.bf16.mxu0 0
    %1089 = vmatpush1.bf16.msra.mxu0 0
    %1090 = vmatprep.subr.bf16.mxu0 0
    %1091 = vmatpush1.bf16.msra.mxu0 0
    %1092 = vmatprep.subr.bf16.mxu0 0
    %1093 = vmatpush1.bf16.msra.mxu0 0
    %1094 = vmatprep.subr.bf16.mxu0 0
    %1095 = vmatpush1.bf16.msra.mxu0 0
    %1096 = vmatprep.subr.bf16.mxu0 0
    %1097 = vmatpush1.bf16.msra.mxu0 0
    %1098 = vmatprep.subr.bf16.mxu0 0
    %1099 = vmatpush1.bf16.msra.mxu0 0
    %1100 = vmatprep.subr.bf16.mxu0 0
    %1101 = vmatpush1.bf16.msra.mxu0 0
    %1102 = vmatprep.subr.bf16.mxu0 0
    %1103 = vmatpush1.bf16.msra.mxu0 0
    %1104 = vmatprep.subr.bf16.mxu0 0
    %1105 = vmatpush1.bf16.msra.mxu0 0
    %1106 = vmatprep.subr.bf16.mxu0 0
    %1107 = vmatpush1.bf16.msra.mxu0 0
    %1108 = vmatprep.subr.bf16.mxu0 0
    %1109 = vmatpush1.bf16.msra.mxu0 0
    %1110 = vmatprep.subr.bf16.mxu0 0
    %1111 = vmatpush1.bf16.msra.mxu0 0
    %1112 = vmatprep.subr.bf16.mxu0 0
    %1113 = vmatpush1.bf16.msra.mxu0 0
    %1114 = vmatprep.mubr.bf16.mxu0 0
    %1115 = vmatmul.mubr.bf16.gmra.mrb[0].mxu0 %v1077
    %v1116 = vpop.f32.mrb[0].mxu0
    %v1117 = vadd.f32 0.0, %v1116
    %v1118 = vpop.f32.mrb[0].mxu0
    %v1119 = vpop.f32.mrb[0].mxu0
    %v1120 = vpop.f32.mrb[0].mxu0
    %1121 = vdwg.mxu0
    %1122 = vrot.lane.b32.xlu0 %v117, 40
    %v1123 = vpop.permute.xlu0 %1122
    %v1125 = vsel %vm129, %v1073, 0
    %v1128 = vsel %vm266, %v1123, 0
    %1130 = vmatprep.subr.bf16.mxu0 0
    %1131 = vmatpush1.bf16.msra.mxu0 %v1128
    %1132 = vmatprep.subr.bf16.mxu0 0
    %1133 = vmatpush1.bf16.msra.mxu0 0
    %1134 = vmatprep.subr.bf16.mxu0 0
    %1135 = vmatpush1.bf16.msra.mxu0 0
    %1136 = vmatprep.subr.bf16.mxu0 0
    %1137 = vmatpush1.bf16.msra.mxu0 0
    %1138 = vmatprep.subr.bf16.mxu0 0
    %1139 = vmatpush1.bf16.msra.mxu0 0
    %1140 = vmatprep.subr.bf16.mxu0 0
    %1141 = vmatpush1.bf16.msra.mxu0 0
    %1142 = vmatprep.subr.bf16.mxu0 0
    %1143 = vmatpush1.bf16.msra.mxu0 0
    %1144 = vmatprep.subr.bf16.mxu0 0
    %1145 = vmatpush1.bf16.msra.mxu0 0
    %1146 = vmatprep.subr.bf16.mxu0 0
    %1147 = vmatpush1.bf16.msra.mxu0 0
    %1148 = vmatprep.subr.bf16.mxu0 0
    %1149 = vmatpush1.bf16.msra.mxu0 0
    %1150 = vmatprep.subr.bf16.mxu0 0
    %1151 = vmatpush1.bf16.msra.mxu0 0
    %1152 = vmatprep.subr.bf16.mxu0 0
    %1153 = vmatpush1.bf16.msra.mxu0 0
    %1154 = vmatprep.subr.bf16.mxu0 0
    %1155 = vmatpush1.bf16.msra.mxu0 0
    %1156 = vmatprep.subr.bf16.mxu0 0
    %1157 = vmatpush1.bf16.msra.mxu0 0
    %1158 = vmatprep.subr.bf16.mxu0 0
    %1159 = vmatpush1.bf16.msra.mxu0 0
    %1160 = vmatprep.subr.bf16.mxu0 0
    %1161 = vmatpush1.bf16.msra.mxu0 0
    %1162 = vmatprep.mubr.bf16.mxu0 0
    %1163 = vmatmul.mubr.bf16.gmra.mrb[0].mxu0 %v1125
    %v1164 = vpop.f32.mrb[0].mxu0
    %v1165 = vadd.f32 0.0, %v1164
    %v1166 = vpop.f32.mrb[0].mxu0
    %v1167 = vpop.f32.mrb[0].mxu0
    %v1168 = vpop.f32.mrb[0].mxu0
    %1169 = vdwg.mxu0
    %v1170 = vpack.c.bf16 %v1165, %v1117
    %v1172 = vsel %vm129, %v1170, 0
    %v1175 = vsel %vm266, %v125, 0
    %1177 = vmatprep.subr.bf16.mxu0 0
    %1178 = vmatpush1.bf16.msra.mxu0 %v1175
    %1179 = vmatprep.subr.bf16.mxu0 0
    %1180 = vmatpush1.bf16.msra.mxu0 0
    %1181 = vmatprep.subr.bf16.mxu0 0
    %1182 = vmatpush1.bf16.msra.mxu0 0
    %1183 = vmatprep.subr.bf16.mxu0 0
    %1184 = vmatpush1.bf16.msra.mxu0 0
    %1185 = vmatprep.subr.bf16.mxu0 0
    %1186 = vmatpush1.bf16.msra.mxu0 0
    %1187 = vmatprep.subr.bf16.mxu0 0
    %1188 = vmatpush1.bf16.msra.mxu0 0
    %1189 = vmatprep.subr.bf16.mxu0 0
    %1190 = vmatpush1.bf16.msra.mxu0 0
    %1191 = vmatprep.subr.bf16.mxu0 0
    %1192 = vmatpush1.bf16.msra.mxu0 0
    %1193 = vmatprep.subr.bf16.mxu0 0
    %1194 = vmatpush1.bf16.msra.mxu0 0
    %1195 = vmatprep.subr.bf16.mxu0 0
    %1196 = vmatpush1.bf16.msra.mxu0 0
    %1197 = vmatprep.subr.bf16.mxu0 0
    %1198 = vmatpush1.bf16.msra.mxu0 0
    %1199 = vmatprep.subr.bf16.mxu0 0
    %1200 = vmatpush1.bf16.msra.mxu0 0
    %1201 = vmatprep.subr.bf16.mxu0 0
    %1202 = vmatpush1.bf16.msra.mxu0 0
    %1203 = vmatprep.subr.bf16.mxu0 0
    %1204 = vmatpush1.bf16.msra.mxu0 0
    %1205 = vmatprep.subr.bf16.mxu0 0
    %1206 = vmatpush1.bf16.msra.mxu0 0
    %1207 = vmatprep.subr.bf16.mxu0 0
    %1208 = vmatpush1.bf16.msra.mxu0 0
    %1209 = vmatprep.mubr.bf16.mxu0 0
    %1210 = vmatmul.mubr.bf16.gmra.mrb[0].mxu0 %v1172
    %v1211 = vpop.f32.mrb[0].mxu0
    %v1212 = vadd.f32 0.0, %v1211
    %v1213 = vpop.f32.mrb[0].mxu0
    %v1214 = vpop.f32.mrb[0].mxu0
    %v1215 = vadd.f32 0.0, %v1214
    %v1216 = vpop.f32.mrb[0].mxu0
    %1217 = vdwg.mxu0
    %v1218 = vadd.f32 %v946, %v1212
    %v1219 = vadd.f32 %v947, %v1215
    %1220 = vst.msk [vmem:[#allocation4] sm:$0xff] %vm129, %v257
    %1221 = vst.msk [vmem:[#allocation4 + $0x8] sm:$0xff] %vm129, %v481
    %1222 = vst.msk [vmem:[#allocation4 + $0x10] sm:$0xff] %vm129, %v798
    %1223 = vst.msk [vmem:[#allocation4 + $0x18] sm:$0xff] %vm129, %v1070
    %1224 = vst.msk [vmem:[#allocation4 + $0x20] sm:$0xff] %vm129, %v258
    %1225 = vst.msk [vmem:[#allocation4 + $0x28] sm:$0xff] %vm129, %v482
    %1226 = vst.msk [vmem:[#allocation4 + $0x30] sm:$0xff] %vm129, %v799
    %1227 = vst.msk [vmem:[#allocation4 + $0x38] sm:$0xff] %vm129, %v1071
    %v1228 = vadd.f32 %v40, %v1218
    %v1229 = vadd.f32 %v41, %v1219
    %v1230 = vlaneseq
    %v1231 = vshrl.u32 %v1230, 7
    %v1232 = vsub.s32 0, %v1231
    %v1233 = vrot.slane %v46, %v1232
    %v1234 = vadd.f32 %v1228, %v1233
    %v1235 = vadd.f32 %v1229, %v1233
    %v1236 = vsel %vm71, %v1234, 0.0
    %1237 = vadd.xlane.f32.xlu0 %v1236
    %v1238 = vpop.xlane.xlu0 %1237
    %v1239 = vsel %vm71, %v1235, 0.0
    %1240 = vadd.xlane.f32.xlu0 %v1239
    %v1241 = vpop.xlane.xlu0 %1240
    %v1242 = vrcp.pop 32.0
    %v1243 = vmul.f32 %v1238, %v1242
    %v1244 = vmul.f32 %v1241, %v1242
    %v1245 = vsub.f32 %v1234, %v1243
    %v1246 = vsub.f32 %v1235, %v1244
    %v1247 = vmul.f32 %v1245, %v1245
    %v1248 = vmul.f32 %v1246, %v1246
    %v1249 = vsel %vm71, %v1247, 0.0
    %1250 = vadd.xlane.f32.xlu0 %v1249
    %v1251 = vpop.xlane.xlu0 %1250
    %v1252 = vsel %vm71, %v1248, 0.0
    %1253 = vadd.xlane.f32.xlu0 %v1252
    %v1254 = vpop.xlane.xlu0 %1253
    %v1255 = vmul.f32 %v1251, %v1242
    %v1256 = vmul.f32 %v1254, %v1242
    %v1257 = vadd.f32 %v1255, 1e-05
    %v1258 = vadd.f32 %v1256, 1e-05
    %v1259 = vrsqrt.pop %v1257
    %v1260 = vrsqrt.pop %v1258
    %v1261 = vmul.f32 %v1245, %v1259
    %v1262 = vmul.f32 %v1246, %v1260
    %v1263 = vlaneseq
    %v1264 = vshrl.u32 %v1263, 7
    %v1265 = vsub.s32 1, %v1264
    %v1266 = vrot.slane %v46, %v1265
    %v1267 = vmul.f32 %v1261, %v1266
    %v1268 = vmul.f32 %v1262, %v1266
    %v1269 = vlaneseq
    %v1270 = vshrl.u32 %v1269, 7
    %v1271 = vsub.s32 2, %v1270
    %v1272 = vrot.slane %v46, %v1271
    %v1273 = vadd.f32 %v1267, %v1272
    %v1274 = vadd.f32 %v1268, %v1272
    %v1275 = vpack.c.bf16 %v1274, %v1273
    %v1276 = vld [vmem:[%s6] sm:$0xf]
    %v1277 = vld [vmem:[%s6 + $0x4] sm:$0xf]
    %v1278 = vld [vmem:[%s6 + $0x8] sm:$0xf]
    %v1279 = vld [vmem:[%s6 + $0xc] sm:$0xf]
    %v1280 = vld [vmem:[%s7] sm:$0x1]
    %v1282 = vlaneseq
    %v1283 = vshrl.u32 %v1282, 7
    %v1284 = vsub.s32 0, %v1283
    %v1285 = vrot.slane %v1280, %v1284
    %v1291 = vunpack.c.l.b16 %v1276
    %v1292 = vunpack.c.l.b16 %v1277
    %v1293 = vunpack.c.l.b16 %v1278
    %v1294 = vunpack.c.l.b16 %v1279
    %v1295 = vpack.c.b16 %v1292, %v1291
    %v1296 = vpack.c.b16 %v1294, %v1293
    %v1300 = vsel %vm71, %v1275, 0
    %1302 = vmatprep.subr.bf16.mxu0 0
    %1303 = vmatpush1.bf16.msra.mxu0 %v1295
    %1304 = vmatprep.subr.bf16.mxu0 0
    %1305 = vmatpush1.bf16.msra.mxu0 %v1296
    %1306 = vmatprep.subr.bf16.mxu0 0
    %1307 = vmatpush1.bf16.msra.mxu0 0
    %1308 = vmatprep.subr.bf16.mxu0 0
    %1309 = vmatpush1.bf16.msra.mxu0 0
    %1310 = vmatprep.subr.bf16.mxu0 0
    %1311 = vmatpush1.bf16.msra.mxu0 0
    %1312 = vmatprep.subr.bf16.mxu0 0
    %1313 = vmatpush1.bf16.msra.mxu0 0
    %1314 = vmatprep.subr.bf16.mxu0 0
    %1315 = vmatpush1.bf16.msra.mxu0 0
    %1316 = vmatprep.subr.bf16.mxu0 0
    %1317 = vmatpush1.bf16.msra.mxu0 0
    %1318 = vmatprep.subr.bf16.mxu0 0
    %1319 = vmatpush1.bf16.msra.mxu0 0
    %1320 = vmatprep.subr.bf16.mxu0 0
    %1321 = vmatpush1.bf16.msra.mxu0 0
    %1322 = vmatprep.subr.bf16.mxu0 0
    %1323 = vmatpush1.bf16.msra.mxu0 0
    %1324 = vmatprep.subr.bf16.mxu0 0
    %1325 = vmatpush1.bf16.msra.mxu0 0
    %1326 = vmatprep.subr.bf16.mxu0 0
    %1327 = vmatpush1.bf16.msra.mxu0 0
    %1328 = vmatprep.subr.bf16.mxu0 0
    %1329 = vmatpush1.bf16.msra.mxu0 0
    %1330 = vmatprep.subr.bf16.mxu0 0
    %1331 = vmatpush1.bf16.msra.mxu0 0
    %1332 = vmatprep.subr.bf16.mxu0 0
    %1333 = vmatpush1.bf16.msra.mxu0 0
    %1334 = vmatprep.mubr.bf16.mxu0 0
    %1335 = vmatmul.mubr.bf16.gmra.mrb[0].mxu0 %v1300
    %v1336 = vpop.f32.mrb[0].mxu0
    %v1337 = vadd.f32 %v1285, %v1336
    %v1338 = vpop.f32.mrb[0].mxu0
    %v1339 = vpop.f32.mrb[0].mxu0
    %v1340 = vadd.f32 %v1285, %v1339
    %v1341 = vpop.f32.mrb[0].mxu0
    %1342 = vdwg.mxu0
    %v1343 = vmax.f32 %v1337, 0.0
    %v1344 = vmax.f32 %v1340, 0.0
    %v1345 = vpack.c.bf16 %v1344, %v1343
    %v1346 = vld [vmem:[%s8] sm:$0xf]
    %v1347 = vld [vmem:[%s8 + $0x4] sm:$0xf]
    %v1348 = vld [vmem:[%s8 + $0x8] sm:$0xf]
    %v1349 = vld [vmem:[%s8 + $0xc] sm:$0xf]
    %v1350 = vld [vmem:[%s8 + $0x10] sm:$0xf]
    %v1351 = vld [vmem:[%s8 + $0x14] sm:$0xf]
    %v1352 = vld [vmem:[%s8 + $0x18] sm:$0xf]
    %v1353 = vld [vmem:[%s8 + $0x1c] sm:$0xf]
    %v1354 = vld [vmem:[%s8 + $0x20] sm:$0xf]
    %v1355 = vld [vmem:[%s8 + $0x24] sm:$0xf]
    %v1356 = vld [vmem:[%s8 + $0x28] sm:$0xf]
    %v1357 = vld [vmem:[%s8 + $0x2c] sm:$0xf]
    %v1358 = vld [vmem:[%s8 + $0x30] sm:$0xf]
    %v1359 = vld [vmem:[%s8 + $0x34] sm:$0xf]
    %v1360 = vld [vmem:[%s8 + $0x38] sm:$0xf]
    %v1361 = vld [vmem:[%s8 + $0x3c] sm:$0xf]
    %v1362 = vlaneseq
    %v1363 = vshrl.u32 %v1362, 7
    %v1364 = vsub.s32 3, %v1363
    %v1365 = vrot.slane %v46, %v1364
    %v1382 = vunpack.c.l.b16 %v1346
    %v1383 = vunpack.c.l.b16 %v1347
    %v1384 = vunpack.c.l.b16 %v1348
    %v1385 = vunpack.c.l.b16 %v1349
    %v1386 = vunpack.c.l.b16 %v1350
    %v1387 = vunpack.c.l.b16 %v1351
    %v1388 = vunpack.c.l.b16 %v1352
    %v1389 = vunpack.c.l.b16 %v1353
    %v1390 = vunpack.c.l.b16 %v1354
    %v1391 = vunpack.c.l.b16 %v1355
    %v1392 = vunpack.c.l.b16 %v1356
    %v1393 = vunpack.c.l.b16 %v1357
    %v1394 = vunpack.c.l.b16 %v1358
    %v1395 = vunpack.c.l.b16 %v1359
    %v1396 = vunpack.c.l.b16 %v1360
    %v1397 = vunpack.c.l.b16 %v1361
    %v1398 = vpack.c.b16 %v1383, %v1382
    %v1399 = vpack.c.b16 %v1385, %v1384
    %v1400 = vpack.c.b16 %v1387, %v1386
    %v1401 = vpack.c.b16 %v1389, %v1388
    %v1402 = vpack.c.b16 %v1391, %v1390
    %v1403 = vpack.c.b16 %v1393, %v1392
    %v1404 = vpack.c.b16 %v1395, %v1394
    %v1405 = vpack.c.b16 %v1397, %v1396
    %1414 = vmatprep.subr.bf16.mxu0 0
    %1415 = vmatpush1.bf16.msra.mxu0 %v1398
    %1416 = vmatprep.subr.bf16.mxu0 0
    %1417 = vmatpush1.bf16.msra.mxu0 %v1399
    %1418 = vmatprep.subr.bf16.mxu0 0
    %1419 = vmatpush1.bf16.msra.mxu0 %v1400
    %1420 = vmatprep.subr.bf16.mxu0 0
    %1421 = vmatpush1.bf16.msra.mxu0 %v1401
    %1422 = vmatprep.subr.bf16.mxu0 0
    %1423 = vmatpush1.bf16.msra.mxu0 %v1402
    %1424 = vmatprep.subr.bf16.mxu0 0
    %1425 = vmatpush1.bf16.msra.mxu0 %v1403
    %1426 = vmatprep.subr.bf16.mxu0 0
    %1427 = vmatpush1.bf16.msra.mxu0 %v1404
    %1428 = vmatprep.subr.bf16.mxu0 0
    %1429 = vmatpush1.bf16.msra.mxu0 %v1405
    %1430 = vmatprep.subr.bf16.mxu0 0
    %1431 = vmatpush1.bf16.msra.mxu0 0
    %1432 = vmatprep.subr.bf16.mxu0 0
    %1433 = vmatpush1.bf16.msra.mxu0 0
    %1434 = vmatprep.subr.bf16.mxu0 0
    %1435 = vmatpush1.bf16.msra.mxu0 0
    %1436 = vmatprep.subr.bf16.mxu0 0
    %1437 = vmatpush1.bf16.msra.mxu0 0
    %1438 = vmatprep.subr.bf16.mxu0 0
    %1439 = vmatpush1.bf16.msra.mxu0 0
    %1440 = vmatprep.subr.bf16.mxu0 0
    %1441 = vmatpush1.bf16.msra.mxu0 0
    %1442 = vmatprep.subr.bf16.mxu0 0
    %1443 = vmatpush1.bf16.msra.mxu0 0
    %1444 = vmatprep.subr.bf16.mxu0 0
    %1445 = vmatpush1.bf16.msra.mxu0 0
    %1446 = vmatprep.mubr.bf16.mxu0 0
    %1447 = vmatmul.mubr.bf16.gmra.mrb[0].mxu0 %v1345
    %v1448 = vpop.f32.mrb[0].mxu0
    %v1449 = vadd.f32 %v1365, %v1448
    %v1450 = vpop.f32.mrb[0].mxu0
    %v1451 = vpop.f32.mrb[0].mxu0
    %v1452 = vadd.f32 %v1365, %v1451
    %v1453 = vpop.f32.mrb[0].mxu0
    %1454 = vdwg.mxu0
    %v1455 = vadd.f32 %v1273, %v1449
    %v1456 = vadd.f32 %v1274, %v1452
    %v1457 = vmul.f32 %v1455, %v250
    %v1458 = vmul.f32 %v1456, %v255
    %v1459 = vsel %vm71, %v1457, 0.0
    %1460 = vadd.xlane.f32.xlu0 %v1459
    %v1461 = vpop.xlane.xlu0 %1460
    %v1462 = vsel %vm71, %v1458, 0.0
    %1463 = vadd.xlane.f32.xlu0 %v1462
    %v1464 = vpop.xlane.xlu0 %1463
    %v1465 = vmul.f32 %v1461, %v1242
    %v1466 = vmul.f32 %v1464, %v1242
    %v1467 = vsub.f32 %v1457, %v1465
    %v1468 = vsub.f32 %v1458, %v1466
    %v1469 = vmul.f32 %v1467, %v1467
    %v1470 = vmul.f32 %v1468, %v1468
    %v1471 = vsel %vm71, %v1469, 0.0
    %1472 = vadd.xlane.f32.xlu0 %v1471
    %v1473 = vpop.xlane.xlu0 %1472
    %v1474 = vsel %vm71, %v1470, 0.0
    %1475 = vadd.xlane.f32.xlu0 %v1474
    %v1476 = vpop.xlane.xlu0 %1475
    %v1477 = vmul.f32 %v1473, %v1242
    %v1478 = vmul.f32 %v1476, %v1242
    %v1479 = vadd.f32 %v1477, 1e-05
    %v1480 = vadd.f32 %v1478, 1e-05
    %v1481 = vrsqrt.pop %v1479
    %v1482 = vrsqrt.pop %v1480
    %v1483 = vmul.f32 %v1467, %v1481
    %v1484 = vmul.f32 %v1468, %v1482
    %v1485 = vlaneseq
    %v1486 = vshrl.u32 %v1485, 7
    %v1487 = vsub.s32 4, %v1486
    %v1488 = vrot.slane %v46, %v1487
    %v1489 = vmul.f32 %v1483, %v1488
    %v1490 = vmul.f32 %v1484, %v1488
    %v1491 = vlaneseq
    %v1492 = vshrl.u32 %v1491, 7
    %v1493 = vsub.s32 5, %v1492
    %v1494 = vrot.slane %v46, %v1493
    %v1495 = vadd.f32 %v1489, %v1494
    %v1496 = vadd.f32 %v1490, %v1494
    %1497 = vst.msk [vmem:[#allocation2] sm:$0xff] %vm71, %v1495
    %1498 = vst.msk [vmem:[#allocation2 + $0x8] sm:$0xff] %vm71, %v1496
    // Predicated region
    $region42: #{tpu_custom_call.1} parent=1 // pred_check
      _
    $region43: #{tpu_custom_call.1} parent=1 // pred_check_branch
      %1500 = sbr.rel (0) target = $region45
    $region44: #{tpu_custom_call.1} parent=1 // pred_region
      %s1502 = ssub.s32 256, 256
      %1503 = vsyncadd [#allocation3], %s1502
      %s1504 = sshll.u32 [#allocation2], 4
      %s1505 = int_to_ptr.vmem [resolvable:$true] %s1504
      %1510 = dma.vmem_to_hbm [thread:$0]  %s1505, 256, %s10, [#allocation3], 128, 128, 8
    $region45: #{tpu_custom_call.1} parent=1 // pred_fallthru
      _
    // Predicated region
    $region46: #{tpu_custom_call.1} parent=1 // pred_check
      _
    $region47: #{tpu_custom_call.1} parent=1 // pred_check_branch
      %1512 = sbr.rel (0) target = $region49
    $region48: #{tpu_custom_call.1} parent=1 // pred_region
      %s1514 = ssub.s32 1024, 1024
      %1515 = vsyncadd [#allocation5], %s1514
      %s1516 = sshll.u32 [#allocation4], 4
      %s1517 = int_to_ptr.vmem [resolvable:$true] %s1516
      %1522 = dma.vmem_to_hbm [thread:$0]  %s1517, 1024, %s11, [#allocation5], 128, 128, 8
    $region49: #{tpu_custom_call.1} parent=1 // pred_fallthru
      _
    // Predicated region
    $region50: #{tpu_custom_call.1} parent=1 // pred_check
      _
    $region51: #{tpu_custom_call.1} parent=1 // pred_check_branch
      %1524 = sbr.rel (0) target = $region53
    $region52: #{tpu_custom_call.1} parent=1 // pred_region
      %1525 = dma.done [#allocation3], 256
    $region53: #{tpu_custom_call.1} parent=1 // pred_fallthru
      _
    // Predicated region
    $region54: #{tpu_custom_call.1} parent=1 // pred_check
      _
    $region55: #{tpu_custom_call.1} parent=1 // pred_check_branch
      %1527 = sbr.rel (0) target = $region57
    $region56: #{tpu_custom_call.1} parent=1 // pred_region
      %1528 = dma.done [#allocation5], 1024
    $region57: #{tpu_custom_call.1} parent=1 // pred_fallthru
      _
    %1529 = vsyncpa [#allocation3], 1
    %1530 = vsyncpa [#allocation5], 1

</llo_original>
